<compile_context>
chip_gen: v7x
topology: tpu7x:2x2x1
jax: 0.10.0
libtpu: 0.0.40
codegen_flags: <defaults>
</compile_context>

<pallas_src>
import math

import jax
import jax.numpy as jnp
import numpy as np
from jax.experimental import pallas as pl
from jax.experimental.pallas import tpu as pltpu

BN_EPS = 1e-5

# dot_general dimension numbers for A @ B.T (contract last dim of both).
_NT_DIMS = (((1,), (1,)), ((), ()))


def _make_fused_kernel(B, S, H, num_heads, head_dim):
    scale = 1.0 / float(math.sqrt(head_dim))

    def kernel(x_ref, gamma_ref, beta_ref, wqkv_ref, wo_ref, o_ref, ctx_ref):
        x = x_ref[...].astype(jnp.float32)                        # (B*S, H)

        # ---- BatchNorm1d, training-mode batch statistics (channels = H) ----
        # TODO(synk): eval-mode running_mean/running_var (and their updates)
        # are not modeled; this matches PyTorch training-mode normalization.
        mean = jnp.mean(x, axis=0, keepdims=True)                 # (1, H)
        var = jnp.mean((x - mean) ** 2, axis=0, keepdims=True)    # biased var
        inv = jax.lax.rsqrt(var + BN_EPS)
        xn = (x - mean) * (inv * gamma_ref[...]) + beta_ref[...]  # (B*S, H)

        # ---- fused QKV projection: one MXU pass, N = 3H ---------------------
        qkv = jnp.dot(xn, wqkv_ref[...],
                      preferred_element_type=jnp.float32)         # (B*S, 3H)

        # ---- per-(batch, head) scaled dot-product attention -----------------
        for b in range(B):                                        # static unroll
            r0, r1 = b * S, (b + 1) * S
            for h in range(num_heads):                            # static unroll
                c0, c1 = h * head_dim, (h + 1) * head_dim
                qh = qkv[r0:r1, c0:c1]                            # (S, dh)
                kh = qkv[r0:r1, H + c0:H + c1]                    # (S, dh)
                vh = qkv[r0:r1, 2 * H + c0:2 * H + c1]            # (S, dh)

                s = jax.lax.dot_general(                          # q @ k.T, no XLU
                    qh, kh, _NT_DIMS,
                    preferred_element_type=jnp.float32) * scale   # (S, S)
                s = s - jnp.max(s, axis=-1, keepdims=True)        # stable softmax
                p = jnp.exp(s)
                p = p * pl.reciprocal(jnp.sum(p, axis=-1, keepdims=True),
                                      approx=True)                # EUP divide

                ctx_ref[r0:r1, c0:c1] = jnp.dot(
                    p, vh, preferred_element_type=jnp.float32)    # write into slab

        # ---- output projection ----------------------------------------------
        out = jnp.dot(ctx_ref[...], wo_ref[...],
                      preferred_element_type=jnp.float32)         # (B*S, H)
        o_ref[...] = out.astype(o_ref.dtype)

    return kernel


def mha_block(x, gamma, beta, wq, wk, wv, wo, num_heads):
    """x: (B, S, H); gamma/beta: (1, H); wq/wk/wv/wo: (H, H) PyTorch convention."""
    B, S, H = x.shape
    assert H % num_heads == 0
    head_dim = H // num_heads

    # Layout plumbing in the wrapper (free): fold batch, pack + pre-transpose
    # weights so the kernel contains no transposes and a single QKV matmul.
    x2d = x.reshape(B * S, H)
    wqkv_t = jnp.concatenate([wq, wk, wv], axis=0).T              # (H, 3H)
    wo_t = wo.T                                                   # (H, H)
    gamma2 = gamma.reshape(1, H).astype(jnp.float32)
    beta2 = beta.reshape(1, H).astype(jnp.float32)

    kernel = _make_fused_kernel(B, S, H, num_heads, head_dim)
    out2d = pl.pallas_call(
        kernel,
        out_shape=jax.ShapeDtypeStruct((B * S, H), x.dtype),
        grid=(1,),
        in_specs=[
            pl.BlockSpec((B * S, H), lambda i: (0, 0)),
            pl.BlockSpec((1, H), lambda i: (0, 0)),
            pl.BlockSpec((1, H), lambda i: (0, 0)),
            pl.BlockSpec((H, 3 * H), lambda i: (0, 0)),
            pl.BlockSpec((H, H), lambda i: (0, 0)),
        ],
        out_specs=pl.BlockSpec((B * S, H), lambda i: (0, 0)),
        scratch_shapes=[pltpu.VMEM((B * S, H), jnp.float32)],      # ctx slab
        compiler_params=pltpu.CompilerParams(
            dimension_semantics=("arbitrary",)),
    )(x2d, gamma2, beta2, wqkv_t, wo_t)
    return out2d.reshape(B, S, H)


# ----------------------------------------------------------------------------
# Pure-JAX reference (same math as the PyTorch module) for correctness check
# ----------------------------------------------------------------------------
def reference(x, gamma, beta, wq, wk, wv, wo, num_heads):
    B, S, H = x.shape
    dh = H // num_heads
    mean = x.mean(axis=(0, 1))
    var = ((x - mean) ** 2).mean(axis=(0, 1))
    xn = (x - mean) / jnp.sqrt(var + BN_EPS) * gamma[0] + beta[0]
    q = xn @ wq.T
    k = xn @ wk.T
    v = xn @ wv.T
    q = q.reshape(B, S, num_heads, dh).transpose(0, 2, 1, 3)
    k = k.reshape(B, S, num_heads, dh).transpose(0, 2, 1, 3)
    v = v.reshape(B, S, num_heads, dh).transpose(0, 2, 1, 3)
    s = jnp.einsum("bhqd,bhkd->bhqk", q, k) / math.sqrt(dh)
    p = jax.nn.softmax(s, axis=-1)
    ctx = jnp.einsum("bhqk,bhkd->bhqd", p, v).transpose(0, 2, 1, 3).reshape(B, S, H)
    return ctx @ wo.T


if __name__ == "__main__":
    B, S, H, NUM_HEADS = 2, 16, 32, 4

    key = jax.random.PRNGKey(0)
    kx, kg, kb, kq, kk, kv, ko = jax.random.split(key, 7)

    x = jax.random.normal(kx, (B, S, H), dtype=jnp.float32)

    # BatchNorm affine params (PyTorch defaults 1 / 0; perturbed deterministically)
    gamma = (1.0 + 0.1 * jax.random.normal(kg, (1, H))).astype(jnp.float32)
    beta = (0.1 * jax.random.normal(kb, (1, H))).astype(jnp.float32)

    # MultiheadAttention weights (bias=False): xavier-uniform-like deterministic init
    bound = math.sqrt(6.0 / (H + H))
    wq = jax.random.uniform(kq, (H, H), minval=-bound, maxval=bound, dtype=jnp.float32)
    wk = jax.random.uniform(kk, (H, H), minval=-bound, maxval=bound, dtype=jnp.float32)
    wv = jax.random.uniform(kv, (H, H), minval=-bound, maxval=bound, dtype=jnp.float32)
    wo = jax.random.uniform(ko, (H, H), minval=-bound, maxval=bound, dtype=jnp.float32)

    out = mha_block(x, gamma, beta, wq, wk, wv, wo, NUM_HEADS)
    out = jax.block_until_ready(out)

    ref = reference(x, gamma, beta, wq, wk, wv, wo, NUM_HEADS)
    # tolerance loosened slightly vs 1e-4 to cover the approx (EUP) reciprocal
    # in the softmax normalization; all matmul math stays f32.
    np.testing.assert_allclose(np.asarray(out), np.asarray(ref), rtol=2e-3, atol=2e-3)

    print("KERNEL_OK")
</pallas_src>

<mosaic_0001>
module attributes {stable_mosaic.version = 11 : i64} {
  func.func @kernel(%arg0: i32, %arg1: memref<32x32xf32, #tpu.memory_space<vmem>>, %arg2: memref<1x32xf32, #tpu.memory_space<vmem>>, %arg3: memref<1x32xf32, #tpu.memory_space<vmem>>, %arg4: memref<32x96xf32, #tpu.memory_space<vmem>>, %arg5: memref<32x32xf32, #tpu.memory_space<vmem>>, %arg6: memref<32x32xf32, #tpu.memory_space<vmem>>, %arg7: memref<32x32xf32, #tpu.memory_space<vmem>>) attributes {dimension_semantics = [#tpu.dimension_semantics<arbitrary>], iteration_bounds = array<i64: 1>, scalar_prefetch = 0 : i64, scratch_operands = 1 : i64, tpu.core_type = #tpu.core_type<tc>, window_params = [{pipeline_mode = #tpu.pipeline_mode<synchronous>, transform_indices = @transform_0, window_bounds = array<i64: 32, 32>}, {pipeline_mode = #tpu.pipeline_mode<synchronous>, transform_indices = @transform_1, window_bounds = array<i64: 1, 32>}, {pipeline_mode = #tpu.pipeline_mode<synchronous>, transform_indices = @transform_2, window_bounds = array<i64: 1, 32>}, {pipeline_mode = #tpu.pipeline_mode<synchronous>, transform_indices = @transform_3, window_bounds = array<i64: 32, 96>}, {pipeline_mode = #tpu.pipeline_mode<synchronous>, transform_indices = @transform_4, window_bounds = array<i64: 32, 32>}, {pipeline_mode = #tpu.pipeline_mode<synchronous>, transform_indices = @transform_5, window_bounds = array<i64: 32, 32>}]} {
    %c0 = arith.constant 0 : index
    %c0_0 = arith.constant 0 : index
    %0 = vector.load %arg1[%c0, %c0_0] : memref<32x32xf32, #tpu.memory_space<vmem>>, vector<32x32xf32>
    %cst = arith.constant dense<0.000000e+00> : vector<32xf32>
    %1 = vector.multi_reduction <add>, %0, %cst [0] : vector<32x32xf32> to vector<32xf32>
    %2 = vector.shape_cast %1 : vector<32xf32> to vector<1x32xf32>
    %cst_1 = arith.constant 3.200000e+01 : f32
    %3 = vector.broadcast %cst_1 : f32 to vector<1x32xf32>
    %4 = arith.divf %2, %3 : vector<1x32xf32>
    %5 = vector.broadcast %4 : vector<1x32xf32> to vector<32x32xf32>
    %6 = arith.subf %0, %5 : vector<32x32xf32>
    %7 = arith.mulf %6, %6 : vector<32x32xf32>
    %cst_2 = arith.constant dense<0.000000e+00> : vector<32xf32>
    %8 = vector.multi_reduction <add>, %7, %cst_2 [0] : vector<32x32xf32> to vector<32xf32>
    %9 = vector.shape_cast %8 : vector<32xf32> to vector<1x32xf32>
    %cst_3 = arith.constant 3.200000e+01 : f32
    %10 = vector.broadcast %cst_3 : f32 to vector<1x32xf32>
    %11 = arith.divf %9, %10 : vector<1x32xf32>
    %cst_4 = arith.constant 9.99999974E-6 : f32
    %12 = vector.broadcast %cst_4 : f32 to vector<1x32xf32>
    %13 = arith.addf %11, %12 : vector<1x32xf32>
    %14 = math.rsqrt %13 : vector<1x32xf32>
    %15 = vector.broadcast %4 : vector<1x32xf32> to vector<32x32xf32>
    %16 = arith.subf %0, %15 : vector<32x32xf32>
    %c0_5 = arith.constant 0 : index
    %c0_6 = arith.constant 0 : index
    %17 = vector.load %arg2[%c0_5, %c0_6] : memref<1x32xf32, #tpu.memory_space<vmem>>, vector<1x32xf32>
    %18 = arith.mulf %14, %17 : vector<1x32xf32>
    %19 = vector.broadcast %18 : vector<1x32xf32> to vector<32x32xf32>
    %20 = arith.mulf %16, %19 : vector<32x32xf32>
    %c0_7 = arith.constant 0 : index
    %c0_8 = arith.constant 0 : index
    %21 = vector.load %arg3[%c0_7, %c0_8] : memref<1x32xf32, #tpu.memory_space<vmem>>, vector<1x32xf32>
    %22 = vector.broadcast %21 : vector<1x32xf32> to vector<32x32xf32>
    %23 = arith.addf %20, %22 : vector<32x32xf32>
    %c0_9 = arith.constant 0 : index
    %c0_10 = arith.constant 0 : index
    %24 = vector.load %arg4[%c0_9, %c0_10] : memref<32x96xf32, #tpu.memory_space<vmem>>, vector<32x96xf32>
    %cst_11 = arith.constant dense<0.000000e+00> : vector<32x96xf32>
    %25 = tpu.matmul %23, %24, %cst_11 {dimension_numbers = #tpu.dot_dimension_numbers<[1], [0], [0], [1], [0, 0, 1, 1], [], []>} : vector<32x32xf32>, vector<32x96xf32>, vector<32x96xf32> -> vector<32x96xf32>
    %26 = vector.extract_strided_slice %25 {offsets = [0, 0], sizes = [16, 8], strides = [1, 1]} : vector<32x96xf32> to vector<16x8xf32>
    %27 = vector.extract_strided_slice %25 {offsets = [0, 32], sizes = [16, 8], strides = [1, 1]} : vector<32x96xf32> to vector<16x8xf32>
    %28 = vector.extract_strided_slice %25 {offsets = [0, 64], sizes = [16, 8], strides = [1, 1]} : vector<32x96xf32> to vector<16x8xf32>
    %cst_12 = arith.constant dense<0.000000e+00> : vector<16x16xf32>
    %29 = tpu.matmul %26, %27, %cst_12 {dimension_numbers = #tpu.dot_dimension_numbers<[1], [1], [0], [0], [0, 0, 1, 0], [], []>} : vector<16x8xf32>, vector<16x8xf32>, vector<16x16xf32> -> vector<16x16xf32>
    %cst_13 = arith.constant 0.353553385 : f32
    %30 = vector.broadcast %cst_13 : f32 to vector<16x16xf32>
    %31 = arith.mulf %29, %30 : vector<16x16xf32>
    %cst_14 = arith.constant dense<0xFF800000> : vector<16xf32>
    %32 = vector.multi_reduction <maximumf>, %31, %cst_14 [1] : vector<16x16xf32> to vector<16xf32>
    %33 = vector.shape_cast %32 : vector<16xf32> to vector<16x1xf32>
    %34 = vector.broadcast %33 : vector<16x1xf32> to vector<16x16xf32>
    %35 = arith.subf %31, %34 : vector<16x16xf32>
    %36 = math.exp %35 : vector<16x16xf32>
    %cst_15 = arith.constant dense<0.000000e+00> : vector<16xf32>
    %37 = vector.multi_reduction <add>, %36, %cst_15 [1] : vector<16x16xf32> to vector<16xf32>
    %38 = vector.shape_cast %37 : vector<16xf32> to vector<16x1xf32>
    %39 = tpu.reciprocal %38 {approx = true} : vector<16x1xf32> -> vector<16x1xf32>
    %40 = vector.broadcast %39 : vector<16x1xf32> to vector<16x16xf32>
    %41 = arith.mulf %36, %40 : vector<16x16xf32>
    %cst_16 = arith.constant dense<0.000000e+00> : vector<16x8xf32>
    %42 = tpu.matmul %41, %28, %cst_16 {dimension_numbers = #tpu.dot_dimension_numbers<[1], [0], [0], [1], [0, 0, 1, 1], [], []>} : vector<16x16xf32>, vector<16x8xf32>, vector<16x8xf32> -> vector<16x8xf32>
    %c0_17 = arith.constant 0 : index
    %c0_18 = arith.constant 0 : index
    %43 = vector.load %arg7[%c0_17, %c0_18] : memref<32x32xf32, #tpu.memory_space<vmem>>, vector<16x8xf32>
    tpu.vector_store %arg7[%c0_17, %c0_18], %42 {strides = array<i32>} : memref<32x32xf32, #tpu.memory_space<vmem>>, vector<16x8xf32>,
    %44 = vector.extract_strided_slice %25 {offsets = [0, 8], sizes = [16, 8], strides = [1, 1]} : vector<32x96xf32> to vector<16x8xf32>
    %45 = vector.extract_strided_slice %25 {offsets = [0, 40], sizes = [16, 8], strides = [1, 1]} : vector<32x96xf32> to vector<16x8xf32>
    %46 = vector.extract_strided_slice %25 {offsets = [0, 72], sizes = [16, 8], strides = [1, 1]} : vector<32x96xf32> to vector<16x8xf32>
    %cst_19 = arith.constant dense<0.000000e+00> : vector<16x16xf32>
    %47 = tpu.matmul %44, %45, %cst_19 {dimension_numbers = #tpu.dot_dimension_numbers<[1], [1], [0], [0], [0, 0, 1, 0], [], []>} : vector<16x8xf32>, vector<16x8xf32>, vector<16x16xf32> -> vector<16x16xf32>
    %cst_20 = arith.constant 0.353553385 : f32
    %48 = vector.broadcast %cst_20 : f32 to vector<16x16xf32>
    %49 = arith.mulf %47, %48 : vector<16x16xf32>
    %cst_21 = arith.constant dense<0xFF800000> : vector<16xf32>
    %50 = vector.multi_reduction <maximumf>, %49, %cst_21 [1] : vector<16x16xf32> to vector<16xf32>
    %51 = vector.shape_cast %50 : vector<16xf32> to vector<16x1xf32>
    %52 = vector.broadcast %51 : vector<16x1xf32> to vector<16x16xf32>
    %53 = arith.subf %49, %52 : vector<16x16xf32>
    %54 = math.exp %53 : vector<16x16xf32>
    %cst_22 = arith.constant dense<0.000000e+00> : vector<16xf32>
    %55 = vector.multi_reduction <add>, %54, %cst_22 [1] : vector<16x16xf32> to vector<16xf32>
    %56 = vector.shape_cast %55 : vector<16xf32> to vector<16x1xf32>
    %57 = tpu.reciprocal %56 {approx = true} : vector<16x1xf32> -> vector<16x1xf32>
    %58 = vector.broadcast %57 : vector<16x1xf32> to vector<16x16xf32>
    %59 = arith.mulf %54, %58 : vector<16x16xf32>
    %cst_23 = arith.constant dense<0.000000e+00> : vector<16x8xf32>
    %60 = tpu.matmul %59, %46, %cst_23 {dimension_numbers = #tpu.dot_dimension_numbers<[1], [0], [0], [1], [0, 0, 1, 1], [], []>} : vector<16x16xf32>, vector<16x8xf32>, vector<16x8xf32> -> vector<16x8xf32>
    %c0_24 = arith.constant 0 : index
    %c8 = arith.constant 8 : index
    %61 = vector.load %arg7[%c0_24, %c8] : memref<32x32xf32, #tpu.memory_space<vmem>>, vector<16x8xf32>
    tpu.vector_store %arg7[%c0_24, %c8], %60 {strides = array<i32>} : memref<32x32xf32, #tpu.memory_space<vmem>>, vector<16x8xf32>,
    %62 = vector.extract_strided_slice %25 {offsets = [0, 16], sizes = [16, 8], strides = [1, 1]} : vector<32x96xf32> to vector<16x8xf32>
    %63 = vector.extract_strided_slice %25 {offsets = [0, 48], sizes = [16, 8], strides = [1, 1]} : vector<32x96xf32> to vector<16x8xf32>
    %64 = vector.extract_strided_slice %25 {offsets = [0, 80], sizes = [16, 8], strides = [1, 1]} : vector<32x96xf32> to vector<16x8xf32>
    %cst_25 = arith.constant dense<0.000000e+00> : vector<16x16xf32>
    %65 = tpu.matmul %62, %63, %cst_25 {dimension_numbers = #tpu.dot_dimension_numbers<[1], [1], [0], [0], [0, 0, 1, 0], [], []>} : vector<16x8xf32>, vector<16x8xf32>, vector<16x16xf32> -> vector<16x16xf32>
    %cst_26 = arith.constant 0.353553385 : f32
    %66 = vector.broadcast %cst_26 : f32 to vector<16x16xf32>
    %67 = arith.mulf %65, %66 : vector<16x16xf32>
    %cst_27 = arith.constant dense<0xFF800000> : vector<16xf32>
    %68 = vector.multi_reduction <maximumf>, %67, %cst_27 [1] : vector<16x16xf32> to vector<16xf32>
    %69 = vector.shape_cast %68 : vector<16xf32> to vector<16x1xf32>
    %70 = vector.broadcast %69 : vector<16x1xf32> to vector<16x16xf32>
    %71 = arith.subf %67, %70 : vector<16x16xf32>
    %72 = math.exp %71 : vector<16x16xf32>
    %cst_28 = arith.constant dense<0.000000e+00> : vector<16xf32>
    %73 = vector.multi_reduction <add>, %72, %cst_28 [1] : vector<16x16xf32> to vector<16xf32>
    %74 = vector.shape_cast %73 : vector<16xf32> to vector<16x1xf32>
    %75 = tpu.reciprocal %74 {approx = true} : vector<16x1xf32> -> vector<16x1xf32>
    %76 = vector.broadcast %75 : vector<16x1xf32> to vector<16x16xf32>
    %77 = arith.mulf %72, %76 : vector<16x16xf32>
    %cst_29 = arith.constant dense<0.000000e+00> : vector<16x8xf32>
    %78 = tpu.matmul %77, %64, %cst_29 {dimension_numbers = #tpu.dot_dimension_numbers<[1], [0], [0], [1], [0, 0, 1, 1], [], []>} : vector<16x16xf32>, vector<16x8xf32>, vector<16x8xf32> -> vector<16x8xf32>
    %c0_30 = arith.constant 0 : index
    %c16 = arith.constant 16 : index
    %79 = vector.load %arg7[%c0_30, %c16] : memref<32x32xf32, #tpu.memory_space<vmem>>, vector<16x8xf32>
    tpu.vector_store %arg7[%c0_30, %c16], %78 {strides = array<i32>} : memref<32x32xf32, #tpu.memory_space<vmem>>, vector<16x8xf32>,
    %80 = vector.extract_strided_slice %25 {offsets = [0, 24], sizes = [16, 8], strides = [1, 1]} : vector<32x96xf32> to vector<16x8xf32>
    %81 = vector.extract_strided_slice %25 {offsets = [0, 56], sizes = [16, 8], strides = [1, 1]} : vector<32x96xf32> to vector<16x8xf32>
    %82 = vector.extract_strided_slice %25 {offsets = [0, 88], sizes = [16, 8], strides = [1, 1]} : vector<32x96xf32> to vector<16x8xf32>
    %cst_31 = arith.constant dense<0.000000e+00> : vector<16x16xf32>
    %83 = tpu.matmul %80, %81, %cst_31 {dimension_numbers = #tpu.dot_dimension_numbers<[1], [1], [0], [0], [0, 0, 1, 0], [], []>} : vector<16x8xf32>, vector<16x8xf32>, vector<16x16xf32> -> vector<16x16xf32>
    %cst_32 = arith.constant 0.353553385 : f32
    %84 = vector.broadcast %cst_32 : f32 to vector<16x16xf32>
    %85 = arith.mulf %83, %84 : vector<16x16xf32>
    %cst_33 = arith.constant dense<0xFF800000> : vector<16xf32>
    %86 = vector.multi_reduction <maximumf>, %85, %cst_33 [1] : vector<16x16xf32> to vector<16xf32>
    %87 = vector.shape_cast %86 : vector<16xf32> to vector<16x1xf32>
    %88 = vector.broadcast %87 : vector<16x1xf32> to vector<16x16xf32>
    %89 = arith.subf %85, %88 : vector<16x16xf32>
    %90 = math.exp %89 : vector<16x16xf32>
    %cst_34 = arith.constant dense<0.000000e+00> : vector<16xf32>
    %91 = vector.multi_reduction <add>, %90, %cst_34 [1] : vector<16x16xf32> to vector<16xf32>
    %92 = vector.shape_cast %91 : vector<16xf32> to vector<16x1xf32>
    %93 = tpu.reciprocal %92 {approx = true} : vector<16x1xf32> -> vector<16x1xf32>
    %94 = vector.broadcast %93 : vector<16x1xf32> to vector<16x16xf32>
    %95 = arith.mulf %90, %94 : vector<16x16xf32>
    %cst_35 = arith.constant dense<0.000000e+00> : vector<16x8xf32>
    %96 = tpu.matmul %95, %82, %cst_35 {dimension_numbers = #tpu.dot_dimension_numbers<[1], [0], [0], [1], [0, 0, 1, 1], [], []>} : vector<16x16xf32>, vector<16x8xf32>, vector<16x8xf32> -> vector<16x8xf32>
    %c0_36 = arith.constant 0 : index
    %c24 = arith.constant 24 : index
    %97 = vector.load %arg7[%c0_36, %c24] : memref<32x32xf32, #tpu.memory_space<vmem>>, vector<16x8xf32>
    tpu.vector_store %arg7[%c0_36, %c24], %96 {strides = array<i32>} : memref<32x32xf32, #tpu.memory_space<vmem>>, vector<16x8xf32>,
    %98 = vector.extract_strided_slice %25 {offsets = [16, 0], sizes = [16, 8], strides = [1, 1]} : vector<32x96xf32> to vector<16x8xf32>
    %99 = vector.extract_strided_slice %25 {offsets = [16, 32], sizes = [16, 8], strides = [1, 1]} : vector<32x96xf32> to vector<16x8xf32>
    %100 = vector.extract_strided_slice %25 {offsets = [16, 64], sizes = [16, 8], strides = [1, 1]} : vector<32x96xf32> to vector<16x8xf32>
    %cst_37 = arith.constant dense<0.000000e+00> : vector<16x16xf32>
    %101 = tpu.matmul %98, %99, %cst_37 {dimension_numbers = #tpu.dot_dimension_numbers<[1], [1], [0], [0], [0, 0, 1, 0], [], []>} : vector<16x8xf32>, vector<16x8xf32>, vector<16x16xf32> -> vector<16x16xf32>
    %cst_38 = arith.constant 0.353553385 : f32
    %102 = vector.broadcast %cst_38 : f32 to vector<16x16xf32>
    %103 = arith.mulf %101, %102 : vector<16x16xf32>
    %cst_39 = arith.constant dense<0xFF800000> : vector<16xf32>
    %104 = vector.multi_reduction <maximumf>, %103, %cst_39 [1] : vector<16x16xf32> to vector<16xf32>
    %105 = vector.shape_cast %104 : vector<16xf32> to vector<16x1xf32>
    %106 = vector.broadcast %105 : vector<16x1xf32> to vector<16x16xf32>
    %107 = arith.subf %103, %106 : vector<16x16xf32>
    %108 = math.exp %107 : vector<16x16xf32>
    %cst_40 = arith.constant dense<0.000000e+00> : vector<16xf32>
    %109 = vector.multi_reduction <add>, %108, %cst_40 [1] : vector<16x16xf32> to vector<16xf32>
    %110 = vector.shape_cast %109 : vector<16xf32> to vector<16x1xf32>
    %111 = tpu.reciprocal %110 {approx = true} : vector<16x1xf32> -> vector<16x1xf32>
    %112 = vector.broadcast %111 : vector<16x1xf32> to vector<16x16xf32>
    %113 = arith.mulf %108, %112 : vector<16x16xf32>
    %cst_41 = arith.constant dense<0.000000e+00> : vector<16x8xf32>
    %114 = tpu.matmul %113, %100, %cst_41 {dimension_numbers = #tpu.dot_dimension_numbers<[1], [0], [0], [1], [0, 0, 1, 1], [], []>} : vector<16x16xf32>, vector<16x8xf32>, vector<16x8xf32> -> vector<16x8xf32>
    %c16_42 = arith.constant 16 : index
    %c0_43 = arith.constant 0 : index
    %115 = vector.load %arg7[%c16_42, %c0_43] : memref<32x32xf32, #tpu.memory_space<vmem>>, vector<16x8xf32>
    tpu.vector_store %arg7[%c16_42, %c0_43], %114 {strides = array<i32>} : memref<32x32xf32, #tpu.memory_space<vmem>>, vector<16x8xf32>,
    %116 = vector.extract_strided_slice %25 {offsets = [16, 8], sizes = [16, 8], strides = [1, 1]} : vector<32x96xf32> to vector<16x8xf32>
    %117 = vector.extract_strided_slice %25 {offsets = [16, 40], sizes = [16, 8], strides = [1, 1]} : vector<32x96xf32> to vector<16x8xf32>
    %118 = vector.extract_strided_slice %25 {offsets = [16, 72], sizes = [16, 8], strides = [1, 1]} : vector<32x96xf32> to vector<16x8xf32>
    %cst_44 = arith.constant dense<0.000000e+00> : vector<16x16xf32>
    %119 = tpu.matmul %116, %117, %cst_44 {dimension_numbers = #tpu.dot_dimension_numbers<[1], [1], [0], [0], [0, 0, 1, 0], [], []>} : vector<16x8xf32>, vector<16x8xf32>, vector<16x16xf32> -> vector<16x16xf32>
    %cst_45 = arith.constant 0.353553385 : f32
    %120 = vector.broadcast %cst_45 : f32 to vector<16x16xf32>
    %121 = arith.mulf %119, %120 : vector<16x16xf32>
    %cst_46 = arith.constant dense<0xFF800000> : vector<16xf32>
    %122 = vector.multi_reduction <maximumf>, %121, %cst_46 [1] : vector<16x16xf32> to vector<16xf32>
    %123 = vector.shape_cast %122 : vector<16xf32> to vector<16x1xf32>
    %124 = vector.broadcast %123 : vector<16x1xf32> to vector<16x16xf32>
    %125 = arith.subf %121, %124 : vector<16x16xf32>
    %126 = math.exp %125 : vector<16x16xf32>
    %cst_47 = arith.constant dense<0.000000e+00> : vector<16xf32>
    %127 = vector.multi_reduction <add>, %126, %cst_47 [1] : vector<16x16xf32> to vector<16xf32>
    %128 = vector.shape_cast %127 : vector<16xf32> to vector<16x1xf32>
    %129 = tpu.reciprocal %128 {approx = true} : vector<16x1xf32> -> vector<16x1xf32>
    %130 = vector.broadcast %129 : vector<16x1xf32> to vector<16x16xf32>
    %131 = arith.mulf %126, %130 : vector<16x16xf32>
    %cst_48 = arith.constant dense<0.000000e+00> : vector<16x8xf32>
    %132 = tpu.matmul %131, %118, %cst_48 {dimension_numbers = #tpu.dot_dimension_numbers<[1], [0], [0], [1], [0, 0, 1, 1], [], []>} : vector<16x16xf32>, vector<16x8xf32>, vector<16x8xf32> -> vector<16x8xf32>
    %c16_49 = arith.constant 16 : index
    %c8_50 = arith.constant 8 : index
    %133 = vector.load %arg7[%c16_49, %c8_50] : memref<32x32xf32, #tpu.memory_space<vmem>>, vector<16x8xf32>
    tpu.vector_store %arg7[%c16_49, %c8_50], %132 {strides = array<i32>} : memref<32x32xf32, #tpu.memory_space<vmem>>, vector<16x8xf32>,
    %134 = vector.extract_strided_slice %25 {offsets = [16, 16], sizes = [16, 8], strides = [1, 1]} : vector<32x96xf32> to vector<16x8xf32>
    %135 = vector.extract_strided_slice %25 {offsets = [16, 48], sizes = [16, 8], strides = [1, 1]} : vector<32x96xf32> to vector<16x8xf32>
    %136 = vector.extract_strided_slice %25 {offsets = [16, 80], sizes = [16, 8], strides = [1, 1]} : vector<32x96xf32> to vector<16x8xf32>
    %cst_51 = arith.constant dense<0.000000e+00> : vector<16x16xf32>
    %137 = tpu.matmul %134, %135, %cst_51 {dimension_numbers = #tpu.dot_dimension_numbers<[1], [1], [0], [0], [0, 0, 1, 0], [], []>} : vector<16x8xf32>, vector<16x8xf32>, vector<16x16xf32> -> vector<16x16xf32>
    %cst_52 = arith.constant 0.353553385 : f32
    %138 = vector.broadcast %cst_52 : f32 to vector<16x16xf32>
    %139 = arith.mulf %137, %138 : vector<16x16xf32>
    %cst_53 = arith.constant dense<0xFF800000> : vector<16xf32>
    %140 = vector.multi_reduction <maximumf>, %139, %cst_53 [1] : vector<16x16xf32> to vector<16xf32>
    %141 = vector.shape_cast %140 : vector<16xf32> to vector<16x1xf32>
    %142 = vector.broadcast %141 : vector<16x1xf32> to vector<16x16xf32>
    %143 = arith.subf %139, %142 : vector<16x16xf32>
    %144 = math.exp %143 : vector<16x16xf32>
    %cst_54 = arith.constant dense<0.000000e+00> : vector<16xf32>
    %145 = vector.multi_reduction <add>, %144, %cst_54 [1] : vector<16x16xf32> to vector<16xf32>
    %146 = vector.shape_cast %145 : vector<16xf32> to vector<16x1xf32>
    %147 = tpu.reciprocal %146 {approx = true} : vector<16x1xf32> -> vector<16x1xf32>
    %148 = vector.broadcast %147 : vector<16x1xf32> to vector<16x16xf32>
    %149 = arith.mulf %144, %148 : vector<16x16xf32>
    %cst_55 = arith.constant dense<0.000000e+00> : vector<16x8xf32>
    %150 = tpu.matmul %149, %136, %cst_55 {dimension_numbers = #tpu.dot_dimension_numbers<[1], [0], [0], [1], [0, 0, 1, 1], [], []>} : vector<16x16xf32>, vector<16x8xf32>, vector<16x8xf32> -> vector<16x8xf32>
    %c16_56 = arith.constant 16 : index
    %c16_57 = arith.constant 16 : index
    %151 = vector.load %arg7[%c16_56, %c16_57] : memref<32x32xf32, #tpu.memory_space<vmem>>, vector<16x8xf32>
    tpu.vector_store %arg7[%c16_56, %c16_57], %150 {strides = array<i32>} : memref<32x32xf32, #tpu.memory_space<vmem>>, vector<16x8xf32>,
    %152 = vector.extract_strided_slice %25 {offsets = [16, 24], sizes = [16, 8], strides = [1, 1]} : vector<32x96xf32> to vector<16x8xf32>
    %153 = vector.extract_strided_slice %25 {offsets = [16, 56], sizes = [16, 8], strides = [1, 1]} : vector<32x96xf32> to vector<16x8xf32>
    %154 = vector.extract_strided_slice %25 {offsets = [16, 88], sizes = [16, 8], strides = [1, 1]} : vector<32x96xf32> to vector<16x8xf32>
    %cst_58 = arith.constant dense<0.000000e+00> : vector<16x16xf32>
    %155 = tpu.matmul %152, %153, %cst_58 {dimension_numbers = #tpu.dot_dimension_numbers<[1], [1], [0], [0], [0, 0, 1, 0], [], []>} : vector<16x8xf32>, vector<16x8xf32>, vector<16x16xf32> -> vector<16x16xf32>
    %cst_59 = arith.constant 0.353553385 : f32
    %156 = vector.broadcast %cst_59 : f32 to vector<16x16xf32>
    %157 = arith.mulf %155, %156 : vector<16x16xf32>
    %cst_60 = arith.constant dense<0xFF800000> : vector<16xf32>
    %158 = vector.multi_reduction <maximumf>, %157, %cst_60 [1] : vector<16x16xf32> to vector<16xf32>
    %159 = vector.shape_cast %158 : vector<16xf32> to vector<16x1xf32>
    %160 = vector.broadcast %159 : vector<16x1xf32> to vector<16x16xf32>
    %161 = arith.subf %157, %160 : vector<16x16xf32>
    %162 = math.exp %161 : vector<16x16xf32>
    %cst_61 = arith.constant dense<0.000000e+00> : vector<16xf32>
    %163 = vector.multi_reduction <add>, %162, %cst_61 [1] : vector<16x16xf32> to vector<16xf32>
    %164 = vector.shape_cast %163 : vector<16xf32> to vector<16x1xf32>
    %165 = tpu.reciprocal %164 {approx = true} : vector<16x1xf32> -> vector<16x1xf32>
    %166 = vector.broadcast %165 : vector<16x1xf32> to vector<16x16xf32>
    %167 = arith.mulf %162, %166 : vector<16x16xf32>
    %cst_62 = arith.constant dense<0.000000e+00> : vector<16x8xf32>
    %168 = tpu.matmul %167, %154, %cst_62 {dimension_numbers = #tpu.dot_dimension_numbers<[1], [0], [0], [1], [0, 0, 1, 1], [], []>} : vector<16x16xf32>, vector<16x8xf32>, vector<16x8xf32> -> vector<16x8xf32>
    %c16_63 = arith.constant 16 : index
    %c24_64 = arith.constant 24 : index
    %169 = vector.load %arg7[%c16_63, %c24_64] : memref<32x32xf32, #tpu.memory_space<vmem>>, vector<16x8xf32>
    tpu.vector_store %arg7[%c16_63, %c24_64], %168 {strides = array<i32>} : memref<32x32xf32, #tpu.memory_space<vmem>>, vector<16x8xf32>,
    %c0_65 = arith.constant 0 : index
    %c0_66 = arith.constant 0 : index
    %170 = vector.load %arg7[%c0_65, %c0_66] : memref<32x32xf32, #tpu.memory_space<vmem>>, vector<32x32xf32>
    %c0_67 = arith.constant 0 : index
    %c0_68 = arith.constant 0 : index
    %171 = vector.load %arg5[%c0_67, %c0_68] : memref<32x32xf32, #tpu.memory_space<vmem>>, vector<32x32xf32>
    %cst_69 = arith.constant dense<0.000000e+00> : vector<32x32xf32>
    %172 = tpu.matmul %170, %171, %cst_69 {dimension_numbers = #tpu.dot_dimension_numbers<[1], [0], [0], [1], [0, 0, 1, 1], [], []>} : vector<32x32xf32>, vector<32x32xf32>, vector<32x32xf32> -> vector<32x32xf32>
    %c0_70 = arith.constant 0 : index
    %c0_71 = arith.constant 0 : index
    %173 = vector.load %arg6[%c0_70, %c0_71] : memref<32x32xf32, #tpu.memory_space<vmem>>, vector<32x32xf32>
    tpu.vector_store %arg6[%c0_70, %c0_71], %172 {strides = array<i32>} : memref<32x32xf32, #tpu.memory_space<vmem>>, vector<32x32xf32>,
    return
  }
  func.func @transform_0(%arg0: i32) -> (i32, i32) {
    %c0_i32 = arith.constant 0 : i32
    %c0_i32_0 = arith.constant 0 : i32
    %c0_i32_1 = arith.constant 0 : i32
    return %c0_i32, %c0_i32_0 : i32, i32
  }
  func.func @transform_1(%arg0: i32) -> (i32, i32) {
    %c0_i32 = arith.constant 0 : i32
    %c0_i32_0 = arith.constant 0 : i32
    %c0_i32_1 = arith.constant 0 : i32
    return %c0_i32, %c0_i32_0 : i32, i32
  }
  func.func @transform_2(%arg0: i32) -> (i32, i32) {
    %c0_i32 = arith.constant 0 : i32
    %c0_i32_0 = arith.constant 0 : i32
    %c0_i32_1 = arith.constant 0 : i32
    return %c0_i32, %c0_i32_0 : i32, i32
  }
  func.func @transform_3(%arg0: i32) -> (i32, i32) {
    %c0_i32 = arith.constant 0 : i32
    %c0_i32_0 = arith.constant 0 : i32
    %c0_i32_1 = arith.constant 0 : i32
    return %c0_i32, %c0_i32_0 : i32, i32
  }
  func.func @transform_4(%arg0: i32) -> (i32, i32) {
    %c0_i32 = arith.constant 0 : i32
    %c0_i32_0 = arith.constant 0 : i32
    %c0_i32_1 = arith.constant 0 : i32
    return %c0_i32, %c0_i32_0 : i32, i32
  }
  func.func @transform_5(%arg0: i32) -> (i32, i32) {
    %c0_i32 = arith.constant 0 : i32
    %c0_i32_0 = arith.constant 0 : i32
    %c0_i32_1 = arith.constant 0 : i32
    return %c0_i32, %c0_i32_0 : i32, i32
  }
}

</mosaic_0001>

<llo_original>
// kernel: tpu_custom_call.1
$region0: #{tpu_custom_call.1}
  #allocation0 [shape = 'u32[]', space=smem, size = 0x4, offset = 0x4, fixed_abs, tag = 'smem constant byte address 0x4 - core index']
  #allocation1 [shape = 'u32[144,128]{1,0:T(1,128)}', space=vmem, size = 0x12000, scoped, tag = 'internal scratch']
  #allocation2 [shape = 'f32[32,32]{1,0:T(8,128)}', space=vmem, size = 0x4000, scoped, tag = 'scratch operand']
  %s0 = inlined_call_operand.hbm [shape: f32[32,32], index: 0, kind: input, shape index: {}]
  %s1 = inlined_call_operand.vmem [shape: f32[1,32], index: 1, kind: input, shape index: {}]
  %s2 = inlined_call_operand.vmem [shape: f32[1,32], index: 2, kind: input, shape index: {}]
  %s3 = inlined_call_operand.hbm [shape: f32[32,96], index: 3, kind: input, shape index: {}]
  %s4 = inlined_call_operand.hbm [shape: f32[32,32], index: 4, kind: input, shape index: {}]
  %s5 = inlined_call_operand.hbm [shape: f32[32,32], index: 5, kind: output, shape index: {}]
  %s6 = sld [smem:[#allocation0]]
  $region42: #{tpu_custom_call.1} parent=0
    _
  %s8 = ssub.s32 1, %s6
  %s9 = scalar_select 0, %s8, %s6
  $region1: #{tpu_custom_call.1} parent=0
    #allocation3 [shape = 'u8[16384]{0}', space=vmem, size = 0x4000, scoped, tag = 'input window, operand 0, single buffered']
    #allocation4 [shape = 's32[1]{0}', space=sflag, size = 0x4, scoped, tag = 'scoped memory for tpu_custom_call.1']
    #allocation5 [shape = 's32[1]{0}', space=sflag, size = 0x4, scoped, tag = 'scoped memory for tpu_custom_call.1']
    #allocation6 [shape = 'u8[16384]{0}', space=vmem, size = 0x4000, scoped, tag = 'input window, operand 3, single buffered']
    #allocation7 [shape = 's32[1]{0}', space=sflag, size = 0x4, scoped, tag = 'scoped memory for tpu_custom_call.1']
    #allocation8 [shape = 'u8[16384]{0}', space=vmem, size = 0x4000, scoped, tag = 'input window, operand 4, single buffered']
    #allocation9 [shape = 'u8[16384]{0}', space=vmem, size = 0x4000, scoped, tag = 'output window, operand 0, single buffered']
    %10 = vsyncpa [#allocation4], 0
    %11 = vsyncpa [#allocation7], 0
    %12 = vsyncpa [#allocation5], 0
    // Predicated region
    $region2: #{tpu_custom_call.1} parent=1 // pred_check
      _
    $region3: #{tpu_custom_call.1} parent=1 // pred_check_branch
      %14 = sbr.rel (0) target = $region5
    $region4: #{tpu_custom_call.1} parent=1 // pred_region
      %s16 = ssub.s32 512, 512
      %17 = vsyncadd [#allocation4], %s16
      %s18 = sshll.u32 [#allocation3], 4
      %s19 = int_to_ptr.vmem [resolvable:$true] %s18
      %24 = dma.hbm_to_vmem [thread:$0]  %s0, 512, %s19, [#allocation4], 128, 128, 8
    $region5: #{tpu_custom_call.1} parent=1 // pred_fallthru
      _
    // Predicated region
    $region6: #{tpu_custom_call.1} parent=1 // pred_check
      _
    $region7: #{tpu_custom_call.1} parent=1 // pred_check_branch
      %26 = sbr.rel (0) target = $region9
    $region8: #{tpu_custom_call.1} parent=1 // pred_region
      _
    $region9: #{tpu_custom_call.1} parent=1 // pred_fallthru
      _
    // Predicated region
    $region10: #{tpu_custom_call.1} parent=1 // pred_check
      _
    $region11: #{tpu_custom_call.1} parent=1 // pred_check_branch
      %28 = sbr.rel (0) target = $region13
    $region12: #{tpu_custom_call.1} parent=1 // pred_region
      _
    $region13: #{tpu_custom_call.1} parent=1 // pred_fallthru
      _
    // Predicated region
    $region14: #{tpu_custom_call.1} parent=1 // pred_check
      _
    $region15: #{tpu_custom_call.1} parent=1 // pred_check_branch
      %30 = sbr.rel (0) target = $region17
    $region16: #{tpu_custom_call.1} parent=1 // pred_region
      %s32 = ssub.s32 512, 512
      %33 = vsyncadd [#allocation7], %s32
      %s34 = sshll.u32 [#allocation6], 4
      %s35 = int_to_ptr.vmem [resolvable:$true] %s34
      %40 = dma.hbm_to_vmem [thread:$0]  %s3, 512, %s35, [#allocation7], 128, 128, 8
    $region17: #{tpu_custom_call.1} parent=1 // pred_fallthru
      _
    // Predicated region
    $region18: #{tpu_custom_call.1} parent=1 // pred_check
      _
    $region19: #{tpu_custom_call.1} parent=1 // pred_check_branch
      %42 = sbr.rel (0) target = $region21
    $region20: #{tpu_custom_call.1} parent=1 // pred_region
      %s44 = ssub.s32 512, 512
      %45 = vsyncadd [#allocation7], %s44
      %s46 = sshll.u32 [#allocation8], 4
      %s47 = int_to_ptr.vmem [resolvable:$true] %s46
      %52 = dma.hbm_to_vmem [thread:$0]  %s4, 512, %s47, [#allocation7], 128, 128, 8
    $region21: #{tpu_custom_call.1} parent=1 // pred_fallthru
      _
    // Predicated region
    $region22: #{tpu_custom_call.1} parent=1 // pred_check
      _
    $region23: #{tpu_custom_call.1} parent=1 // pred_check_branch
      %54 = sbr.rel (0) target = $region25
    $region24: #{tpu_custom_call.1} parent=1 // pred_region
      %55 = dma.done [#allocation4], 512
    $region25: #{tpu_custom_call.1} parent=1 // pred_fallthru
      _
    // Predicated region
    $region26: #{tpu_custom_call.1} parent=1 // pred_check
      _
    $region27: #{tpu_custom_call.1} parent=1 // pred_check_branch
      %57 = sbr.rel (0) target = $region29
    $region28: #{tpu_custom_call.1} parent=1 // pred_region
      %58 = dma.done [#allocation7], 512
    $region29: #{tpu_custom_call.1} parent=1 // pred_fallthru
      _
    // Predicated region
    $region30: #{tpu_custom_call.1} parent=1 // pred_check
      _
    $region31: #{tpu_custom_call.1} parent=1 // pred_check_branch
      %60 = sbr.rel (0) target = $region33
    $region32: #{tpu_custom_call.1} parent=1 // pred_region
      %61 = dma.done [#allocation7], 512
    $region33: #{tpu_custom_call.1} parent=1 // pred_fallthru
      _
    %v62 = vld [vmem:[#allocation3] sm:$0xff]
    %v63 = vld [vmem:[#allocation3 + $0x8] sm:$0xff]
    %v64 = vld [vmem:[#allocation3 + $0x10] sm:$0xff]
    %v65 = vld [vmem:[#allocation3 + $0x18] sm:$0xff]
    %vm66 = vcmask 261120
    %v67 = vsel %vm66, %v62, 0.0
    %v68 = vsel %vm66, %v63, 0.0
    %v69 = vadd.f32 %v67, %v68
    %v70 = vsel %vm66, %v64, 0.0
    %v71 = vadd.f32 %v69, %v70
    %v72 = vsel %vm66, %v65, 0.0
    %v73 = vadd.f32 %v71, %v72
    %v74 = vrot.slane %v73, 4
    %v75 = vadd.f32 %v73, %v74
    %v76 = vrot.slane %v75, 2
    %v77 = vadd.f32 %v75, %v76
    %v78 = vrot.slane %v77, 1
    %v79 = vadd.f32 %v77, %v78
    %v80 = vrcp.pop 32.0
    %v81 = vmul.f32 %v79, %v80
    %v82 = vsub.f32 %v62, %v81
    %v83 = vsub.f32 %v63, %v81
    %v84 = vsub.f32 %v64, %v81
    %v85 = vsub.f32 %v65, %v81
    %v86 = vmul.f32 %v82, %v82
    %v87 = vmul.f32 %v83, %v83
    %v88 = vmul.f32 %v84, %v84
    %v89 = vmul.f32 %v85, %v85
    %v90 = vsel %vm66, %v86, 0.0
    %v91 = vsel %vm66, %v87, 0.0
    %v92 = vadd.f32 %v90, %v91
    %v93 = vsel %vm66, %v88, 0.0
    %v94 = vadd.f32 %v92, %v93
    %v95 = vsel %vm66, %v89, 0.0
    %v96 = vadd.f32 %v94, %v95
    %v97 = vrot.slane %v96, 4
    %v98 = vadd.f32 %v96, %v97
    %v99 = vrot.slane %v98, 2
    %v100 = vadd.f32 %v98, %v99
    %v101 = vrot.slane %v100, 1
    %v102 = vadd.f32 %v100, %v101
    %v103 = vmul.f32 %v102, %v80
    %v104 = vadd.f32 %v103, 1e-05
    %v105 = vrsqrt.pop %v104
    %v106 = vld [vmem:[%s1] sm:$0x1]
    %v107 = vmul.f32 %v105, %v106
    %v108 = vlaneseq
    %v109 = vshrl.u32 %v108, 7
    %v110 = vsub.s32 0, %v109
    %v111 = vrot.slane %v107, %v110
    %v112 = vmul.f32 %v82, %v111
    %v113 = vmul.f32 %v83, %v111
    %v114 = vmul.f32 %v84, %v111
    %v115 = vmul.f32 %v85, %v111
    %v116 = vld [vmem:[%s2] sm:$0x1]
    %v118 = vlaneseq
    %v119 = vshrl.u32 %v118, 7
    %v120 = vsub.s32 0, %v119
    %v121 = vrot.slane %v116, %v120
    %v123 = vadd.f32 %v112, %v121
    %v124 = vadd.f32 %v113, %v121
    %v125 = vadd.f32 %v114, %v121
    %v126 = vadd.f32 %v115, %v121
    %v127 = vld [vmem:[#allocation6] sm:$0xff]
    %v128 = vld [vmem:[#allocation6 + $0x8] sm:$0xff]
    %v129 = vld [vmem:[#allocation6 + $0x10] sm:$0xff]
    %v130 = vld [vmem:[#allocation6 + $0x18] sm:$0xff]
    %v132 = vsel %vm66, %v123, 0
    %v135 = vsel %vm66, %v124, 0
    %v138 = vsel %vm66, %v125, 0
    %v141 = vsel %vm66, %v126, 0
    %143 = vmatprep.subr.mxu0 0.0
    %144 = vmatpush1.msra.mxu0 %v127
    %145 = vmatprep.subr.mxu0 0.0
    %146 = vmatpush1.msra.mxu0 %v128
    %147 = vmatprep.subr.mxu0 0.0
    %148 = vmatpush1.msra.mxu0 %v129
    %149 = vmatprep.subr.mxu0 0.0
    %150 = vmatpush1.msra.mxu0 %v130
    %151 = vmatprep.subr.mxu0 0.0
    %152 = vmatpush1.msra.mxu0 0.0
    %153 = vmatprep.subr.mxu0 0.0
    %154 = vmatpush1.msra.mxu0 0.0
    %155 = vmatprep.subr.mxu0 0.0
    %156 = vmatpush1.msra.mxu0 0.0
    %157 = vmatprep.subr.mxu0 0.0
    %158 = vmatpush1.msra.mxu0 0.0
    %159 = vmatprep.subr.mxu0 0.0
    %160 = vmatpush1.msra.mxu0 0.0
    %161 = vmatprep.subr.mxu0 0.0
    %162 = vmatpush1.msra.mxu0 0.0
    %163 = vmatprep.subr.mxu0 0.0
    %164 = vmatpush1.msra.mxu0 0.0
    %165 = vmatprep.subr.mxu0 0.0
    %166 = vmatpush1.msra.mxu0 0.0
    %167 = vmatprep.subr.mxu0 0.0
    %168 = vmatpush1.msra.mxu0 0.0
    %169 = vmatprep.subr.mxu0 0.0
    %170 = vmatpush1.msra.mxu0 0.0
    %171 = vmatprep.subr.mxu0 0.0
    %172 = vmatpush1.msra.mxu0 0.0
    %173 = vmatprep.subr.mxu0 0.0
    %174 = vmatpush1.msra.mxu0 0.0
    %175 = vmatprep.subr.mxu0 0.0
    %176 = vmatpush1.msra.mxu0 0.0
    %177 = vmatprep.subr.mxu0 0.0
    %178 = vmatpush1.msra.mxu0 0.0
    %179 = vmatprep.subr.mxu0 0.0
    %180 = vmatpush1.msra.mxu0 0.0
    %181 = vmatprep.subr.mxu0 0.0
    %182 = vmatpush1.msra.mxu0 0.0
    %183 = vmatprep.subr.mxu0 0.0
    %184 = vmatpush1.msra.mxu0 0.0
    %185 = vmatprep.subr.mxu0 0.0
    %186 = vmatpush1.msra.mxu0 0.0
    %187 = vmatprep.subr.mxu0 0.0
    %188 = vmatpush1.msra.mxu0 0.0
    %189 = vmatprep.subr.mxu0 0.0
    %190 = vmatpush1.msra.mxu0 0.0
    %191 = vmatprep.subr.mxu0 0.0
    %192 = vmatpush1.msra.mxu0 0.0
    %193 = vmatprep.subr.mxu0 0.0
    %194 = vmatpush1.msra.mxu0 0.0
    %195 = vmatprep.subr.mxu0 0.0
    %196 = vmatpush1.msra.mxu0 0.0
    %197 = vmatprep.subr.mxu0 0.0
    %198 = vmatpush1.msra.mxu0 0.0
    %199 = vmatprep.subr.mxu0 0.0
    %200 = vmatpush1.msra.mxu0 0.0
    %201 = vmatprep.subr.mxu0 0.0
    %202 = vmatpush1.msra.mxu0 0.0
    %203 = vmatprep.subr.mxu0 0.0
    %204 = vmatpush1.msra.mxu0 0.0
    %205 = vmatprep.subr.mxu0 0.0
    %206 = vmatpush1.msra.mxu0 0.0
    %207 = vmatprep.mubr.f32.mxu0 0.0
    %208 = vmatmul.mubr.f32.gmra.mrb[0].mxu0 %v132
    %v209 = vpop.f32.mrb[0].mxu0
    %v210 = vadd.f32 0.0, %v209
    %v211 = vpop.f32.mrb[0].mxu0
    %212 = vmatprep.mubr.f32.mxu0 0.0
    %213 = vmatmul.mubr.f32.gmra.mrb[0].mxu0 %v135
    %v214 = vpop.f32.mrb[0].mxu0
    %v215 = vadd.f32 0.0, %v214
    %v216 = vpop.f32.mrb[0].mxu0
    %217 = vmatprep.mubr.f32.mxu0 0.0
    %218 = vmatmul.mubr.f32.gmra.mrb[0].mxu0 %v138
    %v219 = vpop.f32.mrb[0].mxu0
    %v220 = vadd.f32 0.0, %v219
    %v221 = vpop.f32.mrb[0].mxu0
    %222 = vmatprep.mubr.f32.mxu0 0.0
    %223 = vmatmul.mubr.f32.gmra.mrb[0].mxu0 %v141
    %v224 = vpop.f32.mrb[0].mxu0
    %v225 = vadd.f32 0.0, %v224
    %v226 = vpop.f32.mrb[0].mxu0
    %227 = vdwg.mxu0
    %230 = vrot.lane.b32.xlu0 %v210, 96
    %v231 = vpop.permute.xlu0 %230
    %232 = vrot.lane.b32.xlu0 %v215, 96
    %v233 = vpop.permute.xlu0 %232
    %vm234 = vcmask 64512
    %v235 = vsel %vm234, %v210, 0
    %v237 = vsel %vm234, %v215, 0
    %v239 = vsel %vm234, %v231, 0
    %v241 = vsel %vm234, %v233, 0
    %243 = vmatprep.subr.mxu0 0.0
    %244 = vmatpush1.xpose.msra.mxu0 %v239
    %245 = vmatprep.subr.mxu0 0.0
    %246 = vmatpush1.xpose.msra.mxu0 %v241
    %247 = vmatprep.subr.mxu0 0.0
    %248 = vmatpush1.xpose.msra.mxu0 0.0
    %249 = vmatprep.subr.mxu0 0.0
    %250 = vmatpush1.xpose.msra.mxu0 0.0
    %251 = vmatprep.subr.mxu0 0.0
    %252 = vmatpush1.xpose.msra.mxu0 0.0
    %253 = vmatprep.subr.mxu0 0.0
    %254 = vmatpush1.xpose.msra.mxu0 0.0
    %255 = vmatprep.subr.mxu0 0.0
    %256 = vmatpush1.xpose.msra.mxu0 0.0
    %257 = vmatprep.subr.mxu0 0.0
    %258 = vmatpush1.xpose.msra.mxu0 0.0
    %259 = vmatprep.subr.mxu0 0.0
    %260 = vmatpush1.xpose.msra.mxu0 0.0
    %261 = vmatprep.subr.mxu0 0.0
    %262 = vmatpush1.xpose.msra.mxu0 0.0
    %263 = vmatprep.subr.mxu0 0.0
    %264 = vmatpush1.xpose.msra.mxu0 0.0
    %265 = vmatprep.subr.mxu0 0.0
    %266 = vmatpush1.xpose.msra.mxu0 0.0
    %267 = vmatprep.subr.mxu0 0.0
    %268 = vmatpush1.xpose.msra.mxu0 0.0
    %269 = vmatprep.subr.mxu0 0.0
    %270 = vmatpush1.xpose.msra.mxu0 0.0
    %271 = vmatprep.subr.mxu0 0.0
    %272 = vmatpush1.xpose.msra.mxu0 0.0
    %273 = vmatprep.subr.mxu0 0.0
    %274 = vmatpush1.xpose.msra.mxu0 0.0
    %275 = vmatprep.subr.mxu0 0.0
    %276 = vmatpush1.xpose.msra.mxu0 0.0
    %277 = vmatprep.subr.mxu0 0.0
    %278 = vmatpush1.xpose.msra.mxu0 0.0
    %279 = vmatprep.subr.mxu0 0.0
    %280 = vmatpush1.xpose.msra.mxu0 0.0
    %281 = vmatprep.subr.mxu0 0.0
    %282 = vmatpush1.xpose.msra.mxu0 0.0
    %283 = vmatprep.subr.mxu0 0.0
    %284 = vmatpush1.xpose.msra.mxu0 0.0
    %285 = vmatprep.subr.mxu0 0.0
    %286 = vmatpush1.xpose.msra.mxu0 0.0
    %287 = vmatprep.subr.mxu0 0.0
    %288 = vmatpush1.xpose.msra.mxu0 0.0
    %289 = vmatprep.subr.mxu0 0.0
    %290 = vmatpush1.xpose.msra.mxu0 0.0
    %291 = vmatprep.subr.mxu0 0.0
    %292 = vmatpush1.xpose.msra.mxu0 0.0
    %293 = vmatprep.subr.mxu0 0.0
    %294 = vmatpush1.xpose.msra.mxu0 0.0
    %295 = vmatprep.subr.mxu0 0.0
    %296 = vmatpush1.xpose.msra.mxu0 0.0
    %297 = vmatprep.subr.mxu0 0.0
    %298 = vmatpush1.xpose.msra.mxu0 0.0
    %299 = vmatprep.subr.mxu0 0.0
    %300 = vmatpush1.xpose.msra.mxu0 0.0
    %301 = vmatprep.subr.mxu0 0.0
    %302 = vmatpush1.xpose.msra.mxu0 0.0
    %303 = vmatprep.subr.mxu0 0.0
    %304 = vmatpush1.xpose.msra.mxu0 0.0
    %305 = vmatprep.subr.mxu0 0.0
    %306 = vmatpush1.xpose.msra.mxu0 0.0
    %307 = vmatprep.mubr.f32.mxu0 0.0
    %308 = vmatmul.mubr.f32.gmra.mrb[0].mxu0 %v235
    %v309 = vpop.f32.mrb[0].mxu0
    %v310 = vadd.f32 0.0, %v309
    %v311 = vpop.f32.mrb[0].mxu0
    %312 = vmatprep.mubr.f32.mxu0 0.0
    %313 = vmatmul.mubr.f32.gmra.mrb[0].mxu0 %v237
    %v314 = vpop.f32.mrb[0].mxu0
    %v315 = vadd.f32 0.0, %v314
    %v316 = vpop.f32.mrb[0].mxu0
    %317 = vdwg.mxu0
    %v318 = vmul.f32 %v310, 0.35355338
    %v319 = vmul.f32 %v315, 0.35355338
    %vm320 = vcmask 130048
    %v321 = vsel %vm320, %v318, -inf
    %322 = vmax.xlane.f32.xlu0 %v321
    %v323 = vpop.xlane.xlu0 %322
    %v324 = vsel %vm320, %v319, -inf
    %325 = vmax.xlane.f32.xlu0 %v324
    %v326 = vpop.xlane.xlu0 %325
    %v327 = vsub.f32 %v318, %v323
    %v328 = vsub.f32 %v319, %v326
    %v329 = vmul.f32 %v327, 1.442695
    %v330 = vpow.pop %v329
    %v331 = vmul.f32 %v328, 1.442695
    %v332 = vpow.pop %v331
    %v333 = vsel %vm320, %v330, 0.0
    %334 = vadd.xlane.f32.xlu0 %v333
    %v335 = vpop.xlane.xlu0 %334
    %v336 = vsel %vm320, %v332, 0.0
    %337 = vadd.xlane.f32.xlu0 %v336
    %v338 = vpop.xlane.xlu0 %337
    %v339 = vrcp.pop %v335
    %v340 = vrcp.pop %v338
    %v341 = vmul.f32 %v330, %v339
    %v342 = vmul.f32 %v332, %v340
    %343 = vrot.lane.b32.xlu0 %v210, 64
    %v344 = vpop.permute.xlu0 %343
    %345 = vrot.lane.b32.xlu0 %v215, 64
    %v346 = vpop.permute.xlu0 %345
    %v350 = vsel %vm320, %v341, 0
    %v353 = vsel %vm320, %v342, 0
    %355 = vmatprep.subr.mxu0 0.0
    %356 = vmatpush1.msra.mxu0 %v344
    %357 = vmatprep.subr.mxu0 0.0
    %358 = vmatpush1.msra.mxu0 %v346
    %359 = vmatprep.subr.mxu0 0.0
    %360 = vmatpush1.msra.mxu0 0.0
    %361 = vmatprep.subr.mxu0 0.0
    %362 = vmatpush1.msra.mxu0 0.0
    %363 = vmatprep.subr.mxu0 0.0
    %364 = vmatpush1.msra.mxu0 0.0
    %365 = vmatprep.subr.mxu0 0.0
    %366 = vmatpush1.msra.mxu0 0.0
    %367 = vmatprep.subr.mxu0 0.0
    %368 = vmatpush1.msra.mxu0 0.0
    %369 = vmatprep.subr.mxu0 0.0
    %370 = vmatpush1.msra.mxu0 0.0
    %371 = vmatprep.subr.mxu0 0.0
    %372 = vmatpush1.msra.mxu0 0.0
    %373 = vmatprep.subr.mxu0 0.0
    %374 = vmatpush1.msra.mxu0 0.0
    %375 = vmatprep.subr.mxu0 0.0
    %376 = vmatpush1.msra.mxu0 0.0
    %377 = vmatprep.subr.mxu0 0.0
    %378 = vmatpush1.msra.mxu0 0.0
    %379 = vmatprep.subr.mxu0 0.0
    %380 = vmatpush1.msra.mxu0 0.0
    %381 = vmatprep.subr.mxu0 0.0
    %382 = vmatpush1.msra.mxu0 0.0
    %383 = vmatprep.subr.mxu0 0.0
    %384 = vmatpush1.msra.mxu0 0.0
    %385 = vmatprep.subr.mxu0 0.0
    %386 = vmatpush1.msra.mxu0 0.0
    %387 = vmatprep.subr.mxu0 0.0
    %388 = vmatpush1.msra.mxu0 0.0
    %389 = vmatprep.subr.mxu0 0.0
    %390 = vmatpush1.msra.mxu0 0.0
    %391 = vmatprep.subr.mxu0 0.0
    %392 = vmatpush1.msra.mxu0 0.0
    %393 = vmatprep.subr.mxu0 0.0
    %394 = vmatpush1.msra.mxu0 0.0
    %395 = vmatprep.subr.mxu0 0.0
    %396 = vmatpush1.msra.mxu0 0.0
    %397 = vmatprep.subr.mxu0 0.0
    %398 = vmatpush1.msra.mxu0 0.0
    %399 = vmatprep.subr.mxu0 0.0
    %400 = vmatpush1.msra.mxu0 0.0
    %401 = vmatprep.subr.mxu0 0.0
    %402 = vmatpush1.msra.mxu0 0.0
    %403 = vmatprep.subr.mxu0 0.0
    %404 = vmatpush1.msra.mxu0 0.0
    %405 = vmatprep.subr.mxu0 0.0
    %406 = vmatpush1.msra.mxu0 0.0
    %407 = vmatprep.subr.mxu0 0.0
    %408 = vmatpush1.msra.mxu0 0.0
    %409 = vmatprep.subr.mxu0 0.0
    %410 = vmatpush1.msra.mxu0 0.0
    %411 = vmatprep.subr.mxu0 0.0
    %412 = vmatpush1.msra.mxu0 0.0
    %413 = vmatprep.subr.mxu0 0.0
    %414 = vmatpush1.msra.mxu0 0.0
    %415 = vmatprep.subr.mxu0 0.0
    %416 = vmatpush1.msra.mxu0 0.0
    %417 = vmatprep.subr.mxu0 0.0
    %418 = vmatpush1.msra.mxu0 0.0
    %419 = vmatprep.mubr.f32.mxu0 0.0
    %420 = vmatmul.mubr.f32.gmra.mrb[0].mxu0 %v350
    %v421 = vpop.f32.mrb[0].mxu0
    %v422 = vadd.f32 0.0, %v421
    %v423 = vpop.f32.mrb[0].mxu0
    %424 = vmatprep.mubr.f32.mxu0 0.0
    %425 = vmatmul.mubr.f32.gmra.mrb[0].mxu0 %v353
    %v426 = vpop.f32.mrb[0].mxu0
    %v427 = vadd.f32 0.0, %v426
    %v428 = vpop.f32.mrb[0].mxu0
    %429 = vdwg.mxu0
    %430 = vst.msk [vmem:[#allocation2] sm:$0xff] %vm234, %v422
    %431 = vst.msk [vmem:[#allocation2 + $0x8] sm:$0xff] %vm234, %v427
    %432 = vrot.lane.b32.xlu0 %v210, 120
    %v433 = vpop.permute.xlu0 %432
    %434 = vrot.lane.b32.xlu0 %v215, 120
    %v435 = vpop.permute.xlu0 %434
    %436 = vrot.lane.b32.xlu0 %v210, 88
    %v437 = vpop.permute.xlu0 %436
    %438 = vrot.lane.b32.xlu0 %v215, 88
    %v439 = vpop.permute.xlu0 %438
    %v440 = vsel %vm234, %v433, 0
    %v442 = vsel %vm234, %v435, 0
    %v444 = vsel %vm234, %v437, 0
    %v446 = vsel %vm234, %v439, 0
    %448 = vmatprep.subr.mxu0 0.0
    %449 = vmatpush1.xpose.msra.mxu0 %v444
    %450 = vmatprep.subr.mxu0 0.0
    %451 = vmatpush1.xpose.msra.mxu0 %v446
    %452 = vmatprep.subr.mxu0 0.0
    %453 = vmatpush1.xpose.msra.mxu0 0.0
    %454 = vmatprep.subr.mxu0 0.0
    %455 = vmatpush1.xpose.msra.mxu0 0.0
    %456 = vmatprep.subr.mxu0 0.0
    %457 = vmatpush1.xpose.msra.mxu0 0.0
    %458 = vmatprep.subr.mxu0 0.0
    %459 = vmatpush1.xpose.msra.mxu0 0.0
    %460 = vmatprep.subr.mxu0 0.0
    %461 = vmatpush1.xpose.msra.mxu0 0.0
    %462 = vmatprep.subr.mxu0 0.0
    %463 = vmatpush1.xpose.msra.mxu0 0.0
    %464 = vmatprep.subr.mxu0 0.0
    %465 = vmatpush1.xpose.msra.mxu0 0.0
    %466 = vmatprep.subr.mxu0 0.0
    %467 = vmatpush1.xpose.msra.mxu0 0.0
    %468 = vmatprep.subr.mxu0 0.0
    %469 = vmatpush1.xpose.msra.mxu0 0.0
    %470 = vmatprep.subr.mxu0 0.0
    %471 = vmatpush1.xpose.msra.mxu0 0.0
    %472 = vmatprep.subr.mxu0 0.0
    %473 = vmatpush1.xpose.msra.mxu0 0.0
    %474 = vmatprep.subr.mxu0 0.0
    %475 = vmatpush1.xpose.msra.mxu0 0.0
    %476 = vmatprep.subr.mxu0 0.0
    %477 = vmatpush1.xpose.msra.mxu0 0.0
    %478 = vmatprep.subr.mxu0 0.0
    %479 = vmatpush1.xpose.msra.mxu0 0.0
    %480 = vmatprep.subr.mxu0 0.0
    %481 = vmatpush1.xpose.msra.mxu0 0.0
    %482 = vmatprep.subr.mxu0 0.0
    %483 = vmatpush1.xpose.msra.mxu0 0.0
    %484 = vmatprep.subr.mxu0 0.0
    %485 = vmatpush1.xpose.msra.mxu0 0.0
    %486 = vmatprep.subr.mxu0 0.0
    %487 = vmatpush1.xpose.msra.mxu0 0.0
    %488 = vmatprep.subr.mxu0 0.0
    %489 = vmatpush1.xpose.msra.mxu0 0.0
    %490 = vmatprep.subr.mxu0 0.0
    %491 = vmatpush1.xpose.msra.mxu0 0.0
    %492 = vmatprep.subr.mxu0 0.0
    %493 = vmatpush1.xpose.msra.mxu0 0.0
    %494 = vmatprep.subr.mxu0 0.0
    %495 = vmatpush1.xpose.msra.mxu0 0.0
    %496 = vmatprep.subr.mxu0 0.0
    %497 = vmatpush1.xpose.msra.mxu0 0.0
    %498 = vmatprep.subr.mxu0 0.0
    %499 = vmatpush1.xpose.msra.mxu0 0.0
    %500 = vmatprep.subr.mxu0 0.0
    %501 = vmatpush1.xpose.msra.mxu0 0.0
    %502 = vmatprep.subr.mxu0 0.0
    %503 = vmatpush1.xpose.msra.mxu0 0.0
    %504 = vmatprep.subr.mxu0 0.0
    %505 = vmatpush1.xpose.msra.mxu0 0.0
    %506 = vmatprep.subr.mxu0 0.0
    %507 = vmatpush1.xpose.msra.mxu0 0.0
    %508 = vmatprep.subr.mxu0 0.0
    %509 = vmatpush1.xpose.msra.mxu0 0.0
    %510 = vmatprep.subr.mxu0 0.0
    %511 = vmatpush1.xpose.msra.mxu0 0.0
    %512 = vmatprep.mubr.f32.mxu0 0.0
    %513 = vmatmul.mubr.f32.gmra.mrb[0].mxu0 %v440
    %v514 = vpop.f32.mrb[0].mxu0
    %v515 = vadd.f32 0.0, %v514
    %v516 = vpop.f32.mrb[0].mxu0
    %517 = vmatprep.mubr.f32.mxu0 0.0
    %518 = vmatmul.mubr.f32.gmra.mrb[0].mxu0 %v442
    %v519 = vpop.f32.mrb[0].mxu0
    %v520 = vadd.f32 0.0, %v519
    %v521 = vpop.f32.mrb[0].mxu0
    %522 = vdwg.mxu0
    %v523 = vmul.f32 %v515, 0.35355338
    %v524 = vmul.f32 %v520, 0.35355338
    %v525 = vsel %vm320, %v523, -inf
    %526 = vmax.xlane.f32.xlu0 %v525
    %v527 = vpop.xlane.xlu0 %526
    %v528 = vsel %vm320, %v524, -inf
    %529 = vmax.xlane.f32.xlu0 %v528
    %v530 = vpop.xlane.xlu0 %529
    %v531 = vsub.f32 %v523, %v527
    %v532 = vsub.f32 %v524, %v530
    %v533 = vmul.f32 %v531, 1.442695
    %v534 = vpow.pop %v533
    %v535 = vmul.f32 %v532, 1.442695
    %v536 = vpow.pop %v535
    %v537 = vsel %vm320, %v534, 0.0
    %538 = vadd.xlane.f32.xlu0 %v537
    %v539 = vpop.xlane.xlu0 %538
    %v540 = vsel %vm320, %v536, 0.0
    %541 = vadd.xlane.f32.xlu0 %v540
    %v542 = vpop.xlane.xlu0 %541
    %v543 = vrcp.pop %v539
    %v544 = vrcp.pop %v542
    %v545 = vmul.f32 %v534, %v543
    %v546 = vmul.f32 %v536, %v544
    %547 = vrot.lane.b32.xlu0 %v210, 56
    %v548 = vpop.permute.xlu0 %547
    %549 = vrot.lane.b32.xlu0 %v215, 56
    %v550 = vpop.permute.xlu0 %549
    %v554 = vsel %vm320, %v545, 0
    %v557 = vsel %vm320, %v546, 0
    %559 = vmatprep.subr.mxu0 0.0
    %560 = vmatpush1.msra.mxu0 %v548
    %561 = vmatprep.subr.mxu0 0.0
    %562 = vmatpush1.msra.mxu0 %v550
    %563 = vmatprep.subr.mxu0 0.0
    %564 = vmatpush1.msra.mxu0 0.0
    %565 = vmatprep.subr.mxu0 0.0
    %566 = vmatpush1.msra.mxu0 0.0
    %567 = vmatprep.subr.mxu0 0.0
    %568 = vmatpush1.msra.mxu0 0.0
    %569 = vmatprep.subr.mxu0 0.0
    %570 = vmatpush1.msra.mxu0 0.0
    %571 = vmatprep.subr.mxu0 0.0
    %572 = vmatpush1.msra.mxu0 0.0
    %573 = vmatprep.subr.mxu0 0.0
    %574 = vmatpush1.msra.mxu0 0.0
    %575 = vmatprep.subr.mxu0 0.0
    %576 = vmatpush1.msra.mxu0 0.0
    %577 = vmatprep.subr.mxu0 0.0
    %578 = vmatpush1.msra.mxu0 0.0
    %579 = vmatprep.subr.mxu0 0.0
    %580 = vmatpush1.msra.mxu0 0.0
    %581 = vmatprep.subr.mxu0 0.0
    %582 = vmatpush1.msra.mxu0 0.0
    %583 = vmatprep.subr.mxu0 0.0
    %584 = vmatpush1.msra.mxu0 0.0
    %585 = vmatprep.subr.mxu0 0.0
    %586 = vmatpush1.msra.mxu0 0.0
    %587 = vmatprep.subr.mxu0 0.0
    %588 = vmatpush1.msra.mxu0 0.0
    %589 = vmatprep.subr.mxu0 0.0
    %590 = vmatpush1.msra.mxu0 0.0
    %591 = vmatprep.subr.mxu0 0.0
    %592 = vmatpush1.msra.mxu0 0.0
    %593 = vmatprep.subr.mxu0 0.0
    %594 = vmatpush1.msra.mxu0 0.0
    %595 = vmatprep.subr.mxu0 0.0
    %596 = vmatpush1.msra.mxu0 0.0
    %597 = vmatprep.subr.mxu0 0.0
    %598 = vmatpush1.msra.mxu0 0.0
    %599 = vmatprep.subr.mxu0 0.0
    %600 = vmatpush1.msra.mxu0 0.0
    %601 = vmatprep.subr.mxu0 0.0
    %602 = vmatpush1.msra.mxu0 0.0
    %603 = vmatprep.subr.mxu0 0.0
    %604 = vmatpush1.msra.mxu0 0.0
    %605 = vmatprep.subr.mxu0 0.0
    %606 = vmatpush1.msra.mxu0 0.0
    %607 = vmatprep.subr.mxu0 0.0
    %608 = vmatpush1.msra.mxu0 0.0
    %609 = vmatprep.subr.mxu0 0.0
    %610 = vmatpush1.msra.mxu0 0.0
    %611 = vmatprep.subr.mxu0 0.0
    %612 = vmatpush1.msra.mxu0 0.0
    %613 = vmatprep.subr.mxu0 0.0
    %614 = vmatpush1.msra.mxu0 0.0
    %615 = vmatprep.subr.mxu0 0.0
    %616 = vmatpush1.msra.mxu0 0.0
    %617 = vmatprep.subr.mxu0 0.0
    %618 = vmatpush1.msra.mxu0 0.0
    %619 = vmatprep.subr.mxu0 0.0
    %620 = vmatpush1.msra.mxu0 0.0
    %621 = vmatprep.subr.mxu0 0.0
    %622 = vmatpush1.msra.mxu0 0.0
    %623 = vmatprep.mubr.f32.mxu0 0.0
    %624 = vmatmul.mubr.f32.gmra.mrb[0].mxu0 %v554
    %v625 = vpop.f32.mrb[0].mxu0
    %v626 = vadd.f32 0.0, %v625
    %v627 = vpop.f32.mrb[0].mxu0
    %628 = vmatprep.mubr.f32.mxu0 0.0
    %629 = vmatmul.mubr.f32.gmra.mrb[0].mxu0 %v557
    %v630 = vpop.f32.mrb[0].mxu0
    %v631 = vadd.f32 0.0, %v630
    %v632 = vpop.f32.mrb[0].mxu0
    %633 = vdwg.mxu0
    %636 = vrot.lane.b32.xlu0 %v626, 8
    %v637 = vpop.permute.xlu0 %636
    %638 = vrot.lane.b32.xlu0 %v631, 8
    %v639 = vpop.permute.xlu0 %638
    %vm642 = vcmask 130112
    %643 = vst.msk [vmem:[#allocation2] sm:$0xff] %vm642, %v637
    %644 = vst.msk [vmem:[#allocation2 + $0x8] sm:$0xff] %vm642, %v639
    %645 = vrot.lane.b32.xlu0 %v210, 112
    %v646 = vpop.permute.xlu0 %645
    %647 = vrot.lane.b32.xlu0 %v215, 112
    %v648 = vpop.permute.xlu0 %647
    %649 = vrot.lane.b32.xlu0 %v210, 80
    %v650 = vpop.permute.xlu0 %649
    %651 = vrot.lane.b32.xlu0 %v215, 80
    %v652 = vpop.permute.xlu0 %651
    %v653 = vsel %vm234, %v646, 0
    %v655 = vsel %vm234, %v648, 0
    %v657 = vsel %vm234, %v650, 0
    %v659 = vsel %vm234, %v652, 0
    %661 = vmatprep.subr.mxu0 0.0
    %662 = vmatpush1.xpose.msra.mxu0 %v657
    %663 = vmatprep.subr.mxu0 0.0
    %664 = vmatpush1.xpose.msra.mxu0 %v659
    %665 = vmatprep.subr.mxu0 0.0
    %666 = vmatpush1.xpose.msra.mxu0 0.0
    %667 = vmatprep.subr.mxu0 0.0
    %668 = vmatpush1.xpose.msra.mxu0 0.0
    %669 = vmatprep.subr.mxu0 0.0
    %670 = vmatpush1.xpose.msra.mxu0 0.0
    %671 = vmatprep.subr.mxu0 0.0
    %672 = vmatpush1.xpose.msra.mxu0 0.0
    %673 = vmatprep.subr.mxu0 0.0
    %674 = vmatpush1.xpose.msra.mxu0 0.0
    %675 = vmatprep.subr.mxu0 0.0
    %676 = vmatpush1.xpose.msra.mxu0 0.0
    %677 = vmatprep.subr.mxu0 0.0
    %678 = vmatpush1.xpose.msra.mxu0 0.0
    %679 = vmatprep.subr.mxu0 0.0
    %680 = vmatpush1.xpose.msra.mxu0 0.0
    %681 = vmatprep.subr.mxu0 0.0
    %682 = vmatpush1.xpose.msra.mxu0 0.0
    %683 = vmatprep.subr.mxu0 0.0
    %684 = vmatpush1.xpose.msra.mxu0 0.0
    %685 = vmatprep.subr.mxu0 0.0
    %686 = vmatpush1.xpose.msra.mxu0 0.0
    %687 = vmatprep.subr.mxu0 0.0
    %688 = vmatpush1.xpose.msra.mxu0 0.0
    %689 = vmatprep.subr.mxu0 0.0
    %690 = vmatpush1.xpose.msra.mxu0 0.0
    %691 = vmatprep.subr.mxu0 0.0
    %692 = vmatpush1.xpose.msra.mxu0 0.0
    %693 = vmatprep.subr.mxu0 0.0
    %694 = vmatpush1.xpose.msra.mxu0 0.0
    %695 = vmatprep.subr.mxu0 0.0
    %696 = vmatpush1.xpose.msra.mxu0 0.0
    %697 = vmatprep.subr.mxu0 0.0
    %698 = vmatpush1.xpose.msra.mxu0 0.0
    %699 = vmatprep.subr.mxu0 0.0
    %700 = vmatpush1.xpose.msra.mxu0 0.0
    %701 = vmatprep.subr.mxu0 0.0
    %702 = vmatpush1.xpose.msra.mxu0 0.0
    %703 = vmatprep.subr.mxu0 0.0
    %704 = vmatpush1.xpose.msra.mxu0 0.0
    %705 = vmatprep.subr.mxu0 0.0
    %706 = vmatpush1.xpose.msra.mxu0 0.0
    %707 = vmatprep.subr.mxu0 0.0
    %708 = vmatpush1.xpose.msra.mxu0 0.0
    %709 = vmatprep.subr.mxu0 0.0
    %710 = vmatpush1.xpose.msra.mxu0 0.0
    %711 = vmatprep.subr.mxu0 0.0
    %712 = vmatpush1.xpose.msra.mxu0 0.0
    %713 = vmatprep.subr.mxu0 0.0
    %714 = vmatpush1.xpose.msra.mxu0 0.0
    %715 = vmatprep.subr.mxu0 0.0
    %716 = vmatpush1.xpose.msra.mxu0 0.0
    %717 = vmatprep.subr.mxu0 0.0
    %718 = vmatpush1.xpose.msra.mxu0 0.0
    %719 = vmatprep.subr.mxu0 0.0
    %720 = vmatpush1.xpose.msra.mxu0 0.0
    %721 = vmatprep.subr.mxu0 0.0
    %722 = vmatpush1.xpose.msra.mxu0 0.0
    %723 = vmatprep.subr.mxu0 0.0
    %724 = vmatpush1.xpose.msra.mxu0 0.0
    %725 = vmatprep.mubr.f32.mxu0 0.0
    %726 = vmatmul.mubr.f32.gmra.mrb[0].mxu0 %v653
    %v727 = vpop.f32.mrb[0].mxu0
    %v728 = vadd.f32 0.0, %v727
    %v729 = vpop.f32.mrb[0].mxu0
    %730 = vmatprep.mubr.f32.mxu0 0.0
    %731 = vmatmul.mubr.f32.gmra.mrb[0].mxu0 %v655
    %v732 = vpop.f32.mrb[0].mxu0
    %v733 = vadd.f32 0.0, %v732
    %v734 = vpop.f32.mrb[0].mxu0
    %735 = vdwg.mxu0
    %v736 = vmul.f32 %v728, 0.35355338
    %v737 = vmul.f32 %v733, 0.35355338
    %v738 = vsel %vm320, %v736, -inf
    %739 = vmax.xlane.f32.xlu0 %v738
    %v740 = vpop.xlane.xlu0 %739
    %v741 = vsel %vm320, %v737, -inf
    %742 = vmax.xlane.f32.xlu0 %v741
    %v743 = vpop.xlane.xlu0 %742
    %v744 = vsub.f32 %v736, %v740
    %v745 = vsub.f32 %v737, %v743
    %v746 = vmul.f32 %v744, 1.442695
    %v747 = vpow.pop %v746
    %v748 = vmul.f32 %v745, 1.442695
    %v749 = vpow.pop %v748
    %v750 = vsel %vm320, %v747, 0.0
    %751 = vadd.xlane.f32.xlu0 %v750
    %v752 = vpop.xlane.xlu0 %751
    %v753 = vsel %vm320, %v749, 0.0
    %754 = vadd.xlane.f32.xlu0 %v753
    %v755 = vpop.xlane.xlu0 %754
    %v756 = vrcp.pop %v752
    %v757 = vrcp.pop %v755
    %v758 = vmul.f32 %v747, %v756
    %v759 = vmul.f32 %v749, %v757
    %760 = vrot.lane.b32.xlu0 %v210, 48
    %v761 = vpop.permute.xlu0 %760
    %762 = vrot.lane.b32.xlu0 %v215, 48
    %v763 = vpop.permute.xlu0 %762
    %v767 = vsel %vm320, %v758, 0
    %v770 = vsel %vm320, %v759, 0
    %772 = vmatprep.subr.mxu0 0.0
    %773 = vmatpush1.msra.mxu0 %v761
    %774 = vmatprep.subr.mxu0 0.0
    %775 = vmatpush1.msra.mxu0 %v763
    %776 = vmatprep.subr.mxu0 0.0
    %777 = vmatpush1.msra.mxu0 0.0
    %778 = vmatprep.subr.mxu0 0.0
    %779 = vmatpush1.msra.mxu0 0.0
    %780 = vmatprep.subr.mxu0 0.0
    %781 = vmatpush1.msra.mxu0 0.0
    %782 = vmatprep.subr.mxu0 0.0
    %783 = vmatpush1.msra.mxu0 0.0
    %784 = vmatprep.subr.mxu0 0.0
    %785 = vmatpush1.msra.mxu0 0.0
    %786 = vmatprep.subr.mxu0 0.0
    %787 = vmatpush1.msra.mxu0 0.0
    %788 = vmatprep.subr.mxu0 0.0
    %789 = vmatpush1.msra.mxu0 0.0
    %790 = vmatprep.subr.mxu0 0.0
    %791 = vmatpush1.msra.mxu0 0.0
    %792 = vmatprep.subr.mxu0 0.0
    %793 = vmatpush1.msra.mxu0 0.0
    %794 = vmatprep.subr.mxu0 0.0
    %795 = vmatpush1.msra.mxu0 0.0
    %796 = vmatprep.subr.mxu0 0.0
    %797 = vmatpush1.msra.mxu0 0.0
    %798 = vmatprep.subr.mxu0 0.0
    %799 = vmatpush1.msra.mxu0 0.0
    %800 = vmatprep.subr.mxu0 0.0
    %801 = vmatpush1.msra.mxu0 0.0
    %802 = vmatprep.subr.mxu0 0.0
    %803 = vmatpush1.msra.mxu0 0.0
    %804 = vmatprep.subr.mxu0 0.0
    %805 = vmatpush1.msra.mxu0 0.0
    %806 = vmatprep.subr.mxu0 0.0
    %807 = vmatpush1.msra.mxu0 0.0
    %808 = vmatprep.subr.mxu0 0.0
    %809 = vmatpush1.msra.mxu0 0.0
    %810 = vmatprep.subr.mxu0 0.0
    %811 = vmatpush1.msra.mxu0 0.0
    %812 = vmatprep.subr.mxu0 0.0
    %813 = vmatpush1.msra.mxu0 0.0
    %814 = vmatprep.subr.mxu0 0.0
    %815 = vmatpush1.msra.mxu0 0.0
    %816 = vmatprep.subr.mxu0 0.0
    %817 = vmatpush1.msra.mxu0 0.0
    %818 = vmatprep.subr.mxu0 0.0
    %819 = vmatpush1.msra.mxu0 0.0
    %820 = vmatprep.subr.mxu0 0.0
    %821 = vmatpush1.msra.mxu0 0.0
    %822 = vmatprep.subr.mxu0 0.0
    %823 = vmatpush1.msra.mxu0 0.0
    %824 = vmatprep.subr.mxu0 0.0
    %825 = vmatpush1.msra.mxu0 0.0
    %826 = vmatprep.subr.mxu0 0.0
    %827 = vmatpush1.msra.mxu0 0.0
    %828 = vmatprep.subr.mxu0 0.0
    %829 = vmatpush1.msra.mxu0 0.0
    %830 = vmatprep.subr.mxu0 0.0
    %831 = vmatpush1.msra.mxu0 0.0
    %832 = vmatprep.subr.mxu0 0.0
    %833 = vmatpush1.msra.mxu0 0.0
    %834 = vmatprep.subr.mxu0 0.0
    %835 = vmatpush1.msra.mxu0 0.0
    %836 = vmatprep.mubr.f32.mxu0 0.0
    %837 = vmatmul.mubr.f32.gmra.mrb[0].mxu0 %v767
    %v838 = vpop.f32.mrb[0].mxu0
    %v839 = vadd.f32 0.0, %v838
    %v840 = vpop.f32.mrb[0].mxu0
    %841 = vmatprep.mubr.f32.mxu0 0.0
    %842 = vmatmul.mubr.f32.gmra.mrb[0].mxu0 %v770
    %v843 = vpop.f32.mrb[0].mxu0
    %v844 = vadd.f32 0.0, %v843
    %v845 = vpop.f32.mrb[0].mxu0
    %846 = vdwg.mxu0
    %849 = vrot.lane.b32.xlu0 %v839, 16
    %v850 = vpop.permute.xlu0 %849
    %851 = vrot.lane.b32.xlu0 %v844, 16
    %v852 = vpop.permute.xlu0 %851
    %vm855 = vcmask 195712
    %856 = vst.msk [vmem:[#allocation2] sm:$0xff] %vm855, %v850
    %857 = vst.msk [vmem:[#allocation2 + $0x8] sm:$0xff] %vm855, %v852
    %858 = vrot.lane.b32.xlu0 %v210, 104
    %v859 = vpop.permute.xlu0 %858
    %860 = vrot.lane.b32.xlu0 %v215, 104
    %v861 = vpop.permute.xlu0 %860
    %862 = vrot.lane.b32.xlu0 %v210, 72
    %v863 = vpop.permute.xlu0 %862
    %864 = vrot.lane.b32.xlu0 %v215, 72
    %v865 = vpop.permute.xlu0 %864
    %v866 = vsel %vm234, %v859, 0
    %v868 = vsel %vm234, %v861, 0
    %v870 = vsel %vm234, %v863, 0
    %v872 = vsel %vm234, %v865, 0
    %874 = vmatprep.subr.mxu0 0.0
    %875 = vmatpush1.xpose.msra.mxu0 %v870
    %876 = vmatprep.subr.mxu0 0.0
    %877 = vmatpush1.xpose.msra.mxu0 %v872
    %878 = vmatprep.subr.mxu0 0.0
    %879 = vmatpush1.xpose.msra.mxu0 0.0
    %880 = vmatprep.subr.mxu0 0.0
    %881 = vmatpush1.xpose.msra.mxu0 0.0
    %882 = vmatprep.subr.mxu0 0.0
    %883 = vmatpush1.xpose.msra.mxu0 0.0
    %884 = vmatprep.subr.mxu0 0.0
    %885 = vmatpush1.xpose.msra.mxu0 0.0
    %886 = vmatprep.subr.mxu0 0.0
    %887 = vmatpush1.xpose.msra.mxu0 0.0
    %888 = vmatprep.subr.mxu0 0.0
    %889 = vmatpush1.xpose.msra.mxu0 0.0
    %890 = vmatprep.subr.mxu0 0.0
    %891 = vmatpush1.xpose.msra.mxu0 0.0
    %892 = vmatprep.subr.mxu0 0.0
    %893 = vmatpush1.xpose.msra.mxu0 0.0
    %894 = vmatprep.subr.mxu0 0.0
    %895 = vmatpush1.xpose.msra.mxu0 0.0
    %896 = vmatprep.subr.mxu0 0.0
    %897 = vmatpush1.xpose.msra.mxu0 0.0
    %898 = vmatprep.subr.mxu0 0.0
    %899 = vmatpush1.xpose.msra.mxu0 0.0
    %900 = vmatprep.subr.mxu0 0.0
    %901 = vmatpush1.xpose.msra.mxu0 0.0
    %902 = vmatprep.subr.mxu0 0.0
    %903 = vmatpush1.xpose.msra.mxu0 0.0
    %904 = vmatprep.subr.mxu0 0.0
    %905 = vmatpush1.xpose.msra.mxu0 0.0
    %906 = vmatprep.subr.mxu0 0.0
    %907 = vmatpush1.xpose.msra.mxu0 0.0
    %908 = vmatprep.subr.mxu0 0.0
    %909 = vmatpush1.xpose.msra.mxu0 0.0
    %910 = vmatprep.subr.mxu0 0.0
    %911 = vmatpush1.xpose.msra.mxu0 0.0
    %912 = vmatprep.subr.mxu0 0.0
    %913 = vmatpush1.xpose.msra.mxu0 0.0
    %914 = vmatprep.subr.mxu0 0.0
    %915 = vmatpush1.xpose.msra.mxu0 0.0
    %916 = vmatprep.subr.mxu0 0.0
    %917 = vmatpush1.xpose.msra.mxu0 0.0
    %918 = vmatprep.subr.mxu0 0.0
    %919 = vmatpush1.xpose.msra.mxu0 0.0
    %920 = vmatprep.subr.mxu0 0.0
    %921 = vmatpush1.xpose.msra.mxu0 0.0
    %922 = vmatprep.subr.mxu0 0.0
    %923 = vmatpush1.xpose.msra.mxu0 0.0
    %924 = vmatprep.subr.mxu0 0.0
    %925 = vmatpush1.xpose.msra.mxu0 0.0
    %926 = vmatprep.subr.mxu0 0.0
    %927 = vmatpush1.xpose.msra.mxu0 0.0
    %928 = vmatprep.subr.mxu0 0.0
    %929 = vmatpush1.xpose.msra.mxu0 0.0
    %930 = vmatprep.subr.mxu0 0.0
    %931 = vmatpush1.xpose.msra.mxu0 0.0
    %932 = vmatprep.subr.mxu0 0.0
    %933 = vmatpush1.xpose.msra.mxu0 0.0
    %934 = vmatprep.subr.mxu0 0.0
    %935 = vmatpush1.xpose.msra.mxu0 0.0
    %936 = vmatprep.subr.mxu0 0.0
    %937 = vmatpush1.xpose.msra.mxu0 0.0
    %938 = vmatprep.mubr.f32.mxu0 0.0
    %939 = vmatmul.mubr.f32.gmra.mrb[0].mxu0 %v866
    %v940 = vpop.f32.mrb[0].mxu0
    %v941 = vadd.f32 0.0, %v940
    %v942 = vpop.f32.mrb[0].mxu0
    %943 = vmatprep.mubr.f32.mxu0 0.0
    %944 = vmatmul.mubr.f32.gmra.mrb[0].mxu0 %v868
    %v945 = vpop.f32.mrb[0].mxu0
    %v946 = vadd.f32 0.0, %v945
    %v947 = vpop.f32.mrb[0].mxu0
    %948 = vdwg.mxu0
    %v949 = vmul.f32 %v941, 0.35355338
    %v950 = vmul.f32 %v946, 0.35355338
    %v951 = vsel %vm320, %v949, -inf
    %952 = vmax.xlane.f32.xlu0 %v951
    %v953 = vpop.xlane.xlu0 %952
    %v954 = vsel %vm320, %v950, -inf
    %955 = vmax.xlane.f32.xlu0 %v954
    %v956 = vpop.xlane.xlu0 %955
    %v957 = vsub.f32 %v949, %v953
    %v958 = vsub.f32 %v950, %v956
    %v959 = vmul.f32 %v957, 1.442695
    %v960 = vpow.pop %v959
    %v961 = vmul.f32 %v958, 1.442695
    %v962 = vpow.pop %v961
    %v963 = vsel %vm320, %v960, 0.0
    %964 = vadd.xlane.f32.xlu0 %v963
    %v965 = vpop.xlane.xlu0 %964
    %v966 = vsel %vm320, %v962, 0.0
    %967 = vadd.xlane.f32.xlu0 %v966
    %v968 = vpop.xlane.xlu0 %967
    %v969 = vrcp.pop %v965
    %v970 = vrcp.pop %v968
    %v971 = vmul.f32 %v960, %v969
    %v972 = vmul.f32 %v962, %v970
    %973 = vrot.lane.b32.xlu0 %v210, 40
    %v974 = vpop.permute.xlu0 %973
    %975 = vrot.lane.b32.xlu0 %v215, 40
    %v976 = vpop.permute.xlu0 %975
    %v980 = vsel %vm320, %v971, 0
    %v983 = vsel %vm320, %v972, 0
    %985 = vmatprep.subr.mxu0 0.0
    %986 = vmatpush1.msra.mxu0 %v974
    %987 = vmatprep.subr.mxu0 0.0
    %988 = vmatpush1.msra.mxu0 %v976
    %989 = vmatprep.subr.mxu0 0.0
    %990 = vmatpush1.msra.mxu0 0.0
    %991 = vmatprep.subr.mxu0 0.0
    %992 = vmatpush1.msra.mxu0 0.0
    %993 = vmatprep.subr.mxu0 0.0
    %994 = vmatpush1.msra.mxu0 0.0
    %995 = vmatprep.subr.mxu0 0.0
    %996 = vmatpush1.msra.mxu0 0.0
    %997 = vmatprep.subr.mxu0 0.0
    %998 = vmatpush1.msra.mxu0 0.0
    %999 = vmatprep.subr.mxu0 0.0
    %1000 = vmatpush1.msra.mxu0 0.0
    %1001 = vmatprep.subr.mxu0 0.0
    %1002 = vmatpush1.msra.mxu0 0.0
    %1003 = vmatprep.subr.mxu0 0.0
    %1004 = vmatpush1.msra.mxu0 0.0
    %1005 = vmatprep.subr.mxu0 0.0
    %1006 = vmatpush1.msra.mxu0 0.0
    %1007 = vmatprep.subr.mxu0 0.0
    %1008 = vmatpush1.msra.mxu0 0.0
    %1009 = vmatprep.subr.mxu0 0.0
    %1010 = vmatpush1.msra.mxu0 0.0
    %1011 = vmatprep.subr.mxu0 0.0
    %1012 = vmatpush1.msra.mxu0 0.0
    %1013 = vmatprep.subr.mxu0 0.0
    %1014 = vmatpush1.msra.mxu0 0.0
    %1015 = vmatprep.subr.mxu0 0.0
    %1016 = vmatpush1.msra.mxu0 0.0
    %1017 = vmatprep.subr.mxu0 0.0
    %1018 = vmatpush1.msra.mxu0 0.0
    %1019 = vmatprep.subr.mxu0 0.0
    %1020 = vmatpush1.msra.mxu0 0.0
    %1021 = vmatprep.subr.mxu0 0.0
    %1022 = vmatpush1.msra.mxu0 0.0
    %1023 = vmatprep.subr.mxu0 0.0
    %1024 = vmatpush1.msra.mxu0 0.0
    %1025 = vmatprep.subr.mxu0 0.0
    %1026 = vmatpush1.msra.mxu0 0.0
    %1027 = vmatprep.subr.mxu0 0.0
    %1028 = vmatpush1.msra.mxu0 0.0
    %1029 = vmatprep.subr.mxu0 0.0
    %1030 = vmatpush1.msra.mxu0 0.0
    %1031 = vmatprep.subr.mxu0 0.0
    %1032 = vmatpush1.msra.mxu0 0.0
    %1033 = vmatprep.subr.mxu0 0.0
    %1034 = vmatpush1.msra.mxu0 0.0
    %1035 = vmatprep.subr.mxu0 0.0
    %1036 = vmatpush1.msra.mxu0 0.0
    %1037 = vmatprep.subr.mxu0 0.0
    %1038 = vmatpush1.msra.mxu0 0.0
    %1039 = vmatprep.subr.mxu0 0.0
    %1040 = vmatpush1.msra.mxu0 0.0
    %1041 = vmatprep.subr.mxu0 0.0
    %1042 = vmatpush1.msra.mxu0 0.0
    %1043 = vmatprep.subr.mxu0 0.0
    %1044 = vmatpush1.msra.mxu0 0.0
    %1045 = vmatprep.subr.mxu0 0.0
    %1046 = vmatpush1.msra.mxu0 0.0
    %1047 = vmatprep.subr.mxu0 0.0
    %1048 = vmatpush1.msra.mxu0 0.0
    %1049 = vmatprep.mubr.f32.mxu0 0.0
    %1050 = vmatmul.mubr.f32.gmra.mrb[0].mxu0 %v980
    %v1051 = vpop.f32.mrb[0].mxu0
    %v1052 = vadd.f32 0.0, %v1051
    %v1053 = vpop.f32.mrb[0].mxu0
    %1054 = vmatprep.mubr.f32.mxu0 0.0
    %1055 = vmatmul.mubr.f32.gmra.mrb[0].mxu0 %v983
    %v1056 = vpop.f32.mrb[0].mxu0
    %v1057 = vadd.f32 0.0, %v1056
    %v1058 = vpop.f32.mrb[0].mxu0
    %1059 = vdwg.mxu0
    %1062 = vrot.lane.b32.xlu0 %v1052, 24
    %v1063 = vpop.permute.xlu0 %1062
    %1064 = vrot.lane.b32.xlu0 %v1057, 24
    %v1065 = vpop.permute.xlu0 %1064
    %vm1068 = vcmask 261312
    %1069 = vst.msk [vmem:[#allocation2] sm:$0xff] %vm1068, %v1063
    %1070 = vst.msk [vmem:[#allocation2 + $0x8] sm:$0xff] %vm1068, %v1065
    %1073 = vrot.lane.b32.xlu0 %v220, 96
    %v1074 = vpop.permute.xlu0 %1073
    %1075 = vrot.lane.b32.xlu0 %v225, 96
    %v1076 = vpop.permute.xlu0 %1075
    %v1077 = vsel %vm234, %v220, 0
    %v1079 = vsel %vm234, %v225, 0
    %v1081 = vsel %vm234, %v1074, 0
    %v1083 = vsel %vm234, %v1076, 0
    %1085 = vmatprep.subr.mxu0 0.0
    %1086 = vmatpush1.xpose.msra.mxu0 %v1081
    %1087 = vmatprep.subr.mxu0 0.0
    %1088 = vmatpush1.xpose.msra.mxu0 %v1083
    %1089 = vmatprep.subr.mxu0 0.0
    %1090 = vmatpush1.xpose.msra.mxu0 0.0
    %1091 = vmatprep.subr.mxu0 0.0
    %1092 = vmatpush1.xpose.msra.mxu0 0.0
    %1093 = vmatprep.subr.mxu0 0.0
    %1094 = vmatpush1.xpose.msra.mxu0 0.0
    %1095 = vmatprep.subr.mxu0 0.0
    %1096 = vmatpush1.xpose.msra.mxu0 0.0
    %1097 = vmatprep.subr.mxu0 0.0
    %1098 = vmatpush1.xpose.msra.mxu0 0.0
    %1099 = vmatprep.subr.mxu0 0.0
    %1100 = vmatpush1.xpose.msra.mxu0 0.0
    %1101 = vmatprep.subr.mxu0 0.0
    %1102 = vmatpush1.xpose.msra.mxu0 0.0
    %1103 = vmatprep.subr.mxu0 0.0
    %1104 = vmatpush1.xpose.msra.mxu0 0.0
    %1105 = vmatprep.subr.mxu0 0.0
    %1106 = vmatpush1.xpose.msra.mxu0 0.0
    %1107 = vmatprep.subr.mxu0 0.0
    %1108 = vmatpush1.xpose.msra.mxu0 0.0
    %1109 = vmatprep.subr.mxu0 0.0
    %1110 = vmatpush1.xpose.msra.mxu0 0.0
    %1111 = vmatprep.subr.mxu0 0.0
    %1112 = vmatpush1.xpose.msra.mxu0 0.0
    %1113 = vmatprep.subr.mxu0 0.0
    %1114 = vmatpush1.xpose.msra.mxu0 0.0
    %1115 = vmatprep.subr.mxu0 0.0
    %1116 = vmatpush1.xpose.msra.mxu0 0.0
    %1117 = vmatprep.subr.mxu0 0.0
    %1118 = vmatpush1.xpose.msra.mxu0 0.0
    %1119 = vmatprep.subr.mxu0 0.0
    %1120 = vmatpush1.xpose.msra.mxu0 0.0
    %1121 = vmatprep.subr.mxu0 0.0
    %1122 = vmatpush1.xpose.msra.mxu0 0.0
    %1123 = vmatprep.subr.mxu0 0.0
    %1124 = vmatpush1.xpose.msra.mxu0 0.0
    %1125 = vmatprep.subr.mxu0 0.0
    %1126 = vmatpush1.xpose.msra.mxu0 0.0
    %1127 = vmatprep.subr.mxu0 0.0
    %1128 = vmatpush1.xpose.msra.mxu0 0.0
    %1129 = vmatprep.subr.mxu0 0.0
    %1130 = vmatpush1.xpose.msra.mxu0 0.0
    %1131 = vmatprep.subr.mxu0 0.0
    %1132 = vmatpush1.xpose.msra.mxu0 0.0
    %1133 = vmatprep.subr.mxu0 0.0
    %1134 = vmatpush1.xpose.msra.mxu0 0.0
    %1135 = vmatprep.subr.mxu0 0.0
    %1136 = vmatpush1.xpose.msra.mxu0 0.0
    %1137 = vmatprep.subr.mxu0 0.0
    %1138 = vmatpush1.xpose.msra.mxu0 0.0
    %1139 = vmatprep.subr.mxu0 0.0
    %1140 = vmatpush1.xpose.msra.mxu0 0.0
    %1141 = vmatprep.subr.mxu0 0.0
    %1142 = vmatpush1.xpose.msra.mxu0 0.0
    %1143 = vmatprep.subr.mxu0 0.0
    %1144 = vmatpush1.xpose.msra.mxu0 0.0
    %1145 = vmatprep.subr.mxu0 0.0
    %1146 = vmatpush1.xpose.msra.mxu0 0.0
    %1147 = vmatprep.subr.mxu0 0.0
    %1148 = vmatpush1.xpose.msra.mxu0 0.0
    %1149 = vmatprep.mubr.f32.mxu0 0.0
    %1150 = vmatmul.mubr.f32.gmra.mrb[0].mxu0 %v1077
    %v1151 = vpop.f32.mrb[0].mxu0
    %v1152 = vadd.f32 0.0, %v1151
    %v1153 = vpop.f32.mrb[0].mxu0
    %1154 = vmatprep.mubr.f32.mxu0 0.0
    %1155 = vmatmul.mubr.f32.gmra.mrb[0].mxu0 %v1079
    %v1156 = vpop.f32.mrb[0].mxu0
    %v1157 = vadd.f32 0.0, %v1156
    %v1158 = vpop.f32.mrb[0].mxu0
    %1159 = vdwg.mxu0
    %v1160 = vmul.f32 %v1152, 0.35355338
    %v1161 = vmul.f32 %v1157, 0.35355338
    %v1162 = vsel %vm320, %v1160, -inf
    %1163 = vmax.xlane.f32.xlu0 %v1162
    %v1164 = vpop.xlane.xlu0 %1163
    %v1165 = vsel %vm320, %v1161, -inf
    %1166 = vmax.xlane.f32.xlu0 %v1165
    %v1167 = vpop.xlane.xlu0 %1166
    %v1168 = vsub.f32 %v1160, %v1164
    %v1169 = vsub.f32 %v1161, %v1167
    %v1170 = vmul.f32 %v1168, 1.442695
    %v1171 = vpow.pop %v1170
    %v1172 = vmul.f32 %v1169, 1.442695
    %v1173 = vpow.pop %v1172
    %v1174 = vsel %vm320, %v1171, 0.0
    %1175 = vadd.xlane.f32.xlu0 %v1174
    %v1176 = vpop.xlane.xlu0 %1175
    %v1177 = vsel %vm320, %v1173, 0.0
    %1178 = vadd.xlane.f32.xlu0 %v1177
    %v1179 = vpop.xlane.xlu0 %1178
    %v1180 = vrcp.pop %v1176
    %v1181 = vrcp.pop %v1179
    %v1182 = vmul.f32 %v1171, %v1180
    %v1183 = vmul.f32 %v1173, %v1181
    %1184 = vrot.lane.b32.xlu0 %v220, 64
    %v1185 = vpop.permute.xlu0 %1184
    %1186 = vrot.lane.b32.xlu0 %v225, 64
    %v1187 = vpop.permute.xlu0 %1186
    %v1191 = vsel %vm320, %v1182, 0
    %v1194 = vsel %vm320, %v1183, 0
    %1196 = vmatprep.subr.mxu0 0.0
    %1197 = vmatpush1.msra.mxu0 %v1185
    %1198 = vmatprep.subr.mxu0 0.0
    %1199 = vmatpush1.msra.mxu0 %v1187
    %1200 = vmatprep.subr.mxu0 0.0
    %1201 = vmatpush1.msra.mxu0 0.0
    %1202 = vmatprep.subr.mxu0 0.0
    %1203 = vmatpush1.msra.mxu0 0.0
    %1204 = vmatprep.subr.mxu0 0.0
    %1205 = vmatpush1.msra.mxu0 0.0
    %1206 = vmatprep.subr.mxu0 0.0
    %1207 = vmatpush1.msra.mxu0 0.0
    %1208 = vmatprep.subr.mxu0 0.0
    %1209 = vmatpush1.msra.mxu0 0.0
    %1210 = vmatprep.subr.mxu0 0.0
    %1211 = vmatpush1.msra.mxu0 0.0
    %1212 = vmatprep.subr.mxu0 0.0
    %1213 = vmatpush1.msra.mxu0 0.0
    %1214 = vmatprep.subr.mxu0 0.0
    %1215 = vmatpush1.msra.mxu0 0.0
    %1216 = vmatprep.subr.mxu0 0.0
    %1217 = vmatpush1.msra.mxu0 0.0
    %1218 = vmatprep.subr.mxu0 0.0
    %1219 = vmatpush1.msra.mxu0 0.0
    %1220 = vmatprep.subr.mxu0 0.0
    %1221 = vmatpush1.msra.mxu0 0.0
    %1222 = vmatprep.subr.mxu0 0.0
    %1223 = vmatpush1.msra.mxu0 0.0
    %1224 = vmatprep.subr.mxu0 0.0
    %1225 = vmatpush1.msra.mxu0 0.0
    %1226 = vmatprep.subr.mxu0 0.0
    %1227 = vmatpush1.msra.mxu0 0.0
    %1228 = vmatprep.subr.mxu0 0.0
    %1229 = vmatpush1.msra.mxu0 0.0
    %1230 = vmatprep.subr.mxu0 0.0
    %1231 = vmatpush1.msra.mxu0 0.0
    %1232 = vmatprep.subr.mxu0 0.0
    %1233 = vmatpush1.msra.mxu0 0.0
    %1234 = vmatprep.subr.mxu0 0.0
    %1235 = vmatpush1.msra.mxu0 0.0
    %1236 = vmatprep.subr.mxu0 0.0
    %1237 = vmatpush1.msra.mxu0 0.0
    %1238 = vmatprep.subr.mxu0 0.0
    %1239 = vmatpush1.msra.mxu0 0.0
    %1240 = vmatprep.subr.mxu0 0.0
    %1241 = vmatpush1.msra.mxu0 0.0
    %1242 = vmatprep.subr.mxu0 0.0
    %1243 = vmatpush1.msra.mxu0 0.0
    %1244 = vmatprep.subr.mxu0 0.0
    %1245 = vmatpush1.msra.mxu0 0.0
    %1246 = vmatprep.subr.mxu0 0.0
    %1247 = vmatpush1.msra.mxu0 0.0
    %1248 = vmatprep.subr.mxu0 0.0
    %1249 = vmatpush1.msra.mxu0 0.0
    %1250 = vmatprep.subr.mxu0 0.0
    %1251 = vmatpush1.msra.mxu0 0.0
    %1252 = vmatprep.subr.mxu0 0.0
    %1253 = vmatpush1.msra.mxu0 0.0
    %1254 = vmatprep.subr.mxu0 0.0
    %1255 = vmatpush1.msra.mxu0 0.0
    %1256 = vmatprep.subr.mxu0 0.0
    %1257 = vmatpush1.msra.mxu0 0.0
    %1258 = vmatprep.subr.mxu0 0.0
    %1259 = vmatpush1.msra.mxu0 0.0
    %1260 = vmatprep.mubr.f32.mxu0 0.0
    %1261 = vmatmul.mubr.f32.gmra.mrb[0].mxu0 %v1191
    %v1262 = vpop.f32.mrb[0].mxu0
    %v1263 = vadd.f32 0.0, %v1262
    %v1264 = vpop.f32.mrb[0].mxu0
    %1265 = vmatprep.mubr.f32.mxu0 0.0
    %1266 = vmatmul.mubr.f32.gmra.mrb[0].mxu0 %v1194
    %v1267 = vpop.f32.mrb[0].mxu0
    %v1268 = vadd.f32 0.0, %v1267
    %v1269 = vpop.f32.mrb[0].mxu0
    %1270 = vdwg.mxu0
    %1271 = vst.msk [vmem:[#allocation2 + $0x10] sm:$0xff] %vm234, %v1263
    %1272 = vst.msk [vmem:[#allocation2 + $0x18] sm:$0xff] %vm234, %v1268
    %1273 = vrot.lane.b32.xlu0 %v220, 120
    %v1274 = vpop.permute.xlu0 %1273
    %1275 = vrot.lane.b32.xlu0 %v225, 120
    %v1276 = vpop.permute.xlu0 %1275
    %1277 = vrot.lane.b32.xlu0 %v220, 88
    %v1278 = vpop.permute.xlu0 %1277
    %1279 = vrot.lane.b32.xlu0 %v225, 88
    %v1280 = vpop.permute.xlu0 %1279
    %v1281 = vsel %vm234, %v1274, 0
    %v1283 = vsel %vm234, %v1276, 0
    %v1285 = vsel %vm234, %v1278, 0
    %v1287 = vsel %vm234, %v1280, 0
    %1289 = vmatprep.subr.mxu0 0.0
    %1290 = vmatpush1.xpose.msra.mxu0 %v1285
    %1291 = vmatprep.subr.mxu0 0.0
    %1292 = vmatpush1.xpose.msra.mxu0 %v1287
    %1293 = vmatprep.subr.mxu0 0.0
    %1294 = vmatpush1.xpose.msra.mxu0 0.0
    %1295 = vmatprep.subr.mxu0 0.0
    %1296 = vmatpush1.xpose.msra.mxu0 0.0
    %1297 = vmatprep.subr.mxu0 0.0
    %1298 = vmatpush1.xpose.msra.mxu0 0.0
    %1299 = vmatprep.subr.mxu0 0.0
    %1300 = vmatpush1.xpose.msra.mxu0 0.0
    %1301 = vmatprep.subr.mxu0 0.0
    %1302 = vmatpush1.xpose.msra.mxu0 0.0
    %1303 = vmatprep.subr.mxu0 0.0
    %1304 = vmatpush1.xpose.msra.mxu0 0.0
    %1305 = vmatprep.subr.mxu0 0.0
    %1306 = vmatpush1.xpose.msra.mxu0 0.0
    %1307 = vmatprep.subr.mxu0 0.0
    %1308 = vmatpush1.xpose.msra.mxu0 0.0
    %1309 = vmatprep.subr.mxu0 0.0
    %1310 = vmatpush1.xpose.msra.mxu0 0.0
    %1311 = vmatprep.subr.mxu0 0.0
    %1312 = vmatpush1.xpose.msra.mxu0 0.0
    %1313 = vmatprep.subr.mxu0 0.0
    %1314 = vmatpush1.xpose.msra.mxu0 0.0
    %1315 = vmatprep.subr.mxu0 0.0
    %1316 = vmatpush1.xpose.msra.mxu0 0.0
    %1317 = vmatprep.subr.mxu0 0.0
    %1318 = vmatpush1.xpose.msra.mxu0 0.0
    %1319 = vmatprep.subr.mxu0 0.0
    %1320 = vmatpush1.xpose.msra.mxu0 0.0
    %1321 = vmatprep.subr.mxu0 0.0
    %1322 = vmatpush1.xpose.msra.mxu0 0.0
    %1323 = vmatprep.subr.mxu0 0.0
    %1324 = vmatpush1.xpose.msra.mxu0 0.0
    %1325 = vmatprep.subr.mxu0 0.0
    %1326 = vmatpush1.xpose.msra.mxu0 0.0
    %1327 = vmatprep.subr.mxu0 0.0
    %1328 = vmatpush1.xpose.msra.mxu0 0.0
    %1329 = vmatprep.subr.mxu0 0.0
    %1330 = vmatpush1.xpose.msra.mxu0 0.0
    %1331 = vmatprep.subr.mxu0 0.0
    %1332 = vmatpush1.xpose.msra.mxu0 0.0
    %1333 = vmatprep.subr.mxu0 0.0
    %1334 = vmatpush1.xpose.msra.mxu0 0.0
    %1335 = vmatprep.subr.mxu0 0.0
    %1336 = vmatpush1.xpose.msra.mxu0 0.0
    %1337 = vmatprep.subr.mxu0 0.0
    %1338 = vmatpush1.xpose.msra.mxu0 0.0
    %1339 = vmatprep.subr.mxu0 0.0
    %1340 = vmatpush1.xpose.msra.mxu0 0.0
    %1341 = vmatprep.subr.mxu0 0.0
    %1342 = vmatpush1.xpose.msra.mxu0 0.0
    %1343 = vmatprep.subr.mxu0 0.0
    %1344 = vmatpush1.xpose.msra.mxu0 0.0
    %1345 = vmatprep.subr.mxu0 0.0
    %1346 = vmatpush1.xpose.msra.mxu0 0.0
    %1347 = vmatprep.subr.mxu0 0.0
    %1348 = vmatpush1.xpose.msra.mxu0 0.0
    %1349 = vmatprep.subr.mxu0 0.0
    %1350 = vmatpush1.xpose.msra.mxu0 0.0
    %1351 = vmatprep.subr.mxu0 0.0
    %1352 = vmatpush1.xpose.msra.mxu0 0.0
    %1353 = vmatprep.mubr.f32.mxu0 0.0
    %1354 = vmatmul.mubr.f32.gmra.mrb[0].mxu0 %v1281
    %v1355 = vpop.f32.mrb[0].mxu0
    %v1356 = vadd.f32 0.0, %v1355
    %v1357 = vpop.f32.mrb[0].mxu0
    %1358 = vmatprep.mubr.f32.mxu0 0.0
    %1359 = vmatmul.mubr.f32.gmra.mrb[0].mxu0 %v1283
    %v1360 = vpop.f32.mrb[0].mxu0
    %v1361 = vadd.f32 0.0, %v1360
    %v1362 = vpop.f32.mrb[0].mxu0
    %1363 = vdwg.mxu0
    %v1364 = vmul.f32 %v1356, 0.35355338
    %v1365 = vmul.f32 %v1361, 0.35355338
    %v1366 = vsel %vm320, %v1364, -inf
    %1367 = vmax.xlane.f32.xlu0 %v1366
    %v1368 = vpop.xlane.xlu0 %1367
    %v1369 = vsel %vm320, %v1365, -inf
    %1370 = vmax.xlane.f32.xlu0 %v1369
    %v1371 = vpop.xlane.xlu0 %1370
    %v1372 = vsub.f32 %v1364, %v1368
    %v1373 = vsub.f32 %v1365, %v1371
    %v1374 = vmul.f32 %v1372, 1.442695
    %v1375 = vpow.pop %v1374
    %v1376 = vmul.f32 %v1373, 1.442695
    %v1377 = vpow.pop %v1376
    %v1378 = vsel %vm320, %v1375, 0.0
    %1379 = vadd.xlane.f32.xlu0 %v1378
    %v1380 = vpop.xlane.xlu0 %1379
    %v1381 = vsel %vm320, %v1377, 0.0
    %1382 = vadd.xlane.f32.xlu0 %v1381
    %v1383 = vpop.xlane.xlu0 %1382
    %v1384 = vrcp.pop %v1380
    %v1385 = vrcp.pop %v1383
    %v1386 = vmul.f32 %v1375, %v1384
    %v1387 = vmul.f32 %v1377, %v1385
    %1388 = vrot.lane.b32.xlu0 %v220, 56
    %v1389 = vpop.permute.xlu0 %1388
    %1390 = vrot.lane.b32.xlu0 %v225, 56
    %v1391 = vpop.permute.xlu0 %1390
    %v1395 = vsel %vm320, %v1386, 0
    %v1398 = vsel %vm320, %v1387, 0
    %1400 = vmatprep.subr.mxu0 0.0
    %1401 = vmatpush1.msra.mxu0 %v1389
    %1402 = vmatprep.subr.mxu0 0.0
    %1403 = vmatpush1.msra.mxu0 %v1391
    %1404 = vmatprep.subr.mxu0 0.0
    %1405 = vmatpush1.msra.mxu0 0.0
    %1406 = vmatprep.subr.mxu0 0.0
    %1407 = vmatpush1.msra.mxu0 0.0
    %1408 = vmatprep.subr.mxu0 0.0
    %1409 = vmatpush1.msra.mxu0 0.0
    %1410 = vmatprep.subr.mxu0 0.0
    %1411 = vmatpush1.msra.mxu0 0.0
    %1412 = vmatprep.subr.mxu0 0.0
    %1413 = vmatpush1.msra.mxu0 0.0
    %1414 = vmatprep.subr.mxu0 0.0
    %1415 = vmatpush1.msra.mxu0 0.0
    %1416 = vmatprep.subr.mxu0 0.0
    %1417 = vmatpush1.msra.mxu0 0.0
    %1418 = vmatprep.subr.mxu0 0.0
    %1419 = vmatpush1.msra.mxu0 0.0
    %1420 = vmatprep.subr.mxu0 0.0
    %1421 = vmatpush1.msra.mxu0 0.0
    %1422 = vmatprep.subr.mxu0 0.0
    %1423 = vmatpush1.msra.mxu0 0.0
    %1424 = vmatprep.subr.mxu0 0.0
    %1425 = vmatpush1.msra.mxu0 0.0
    %1426 = vmatprep.subr.mxu0 0.0
    %1427 = vmatpush1.msra.mxu0 0.0
    %1428 = vmatprep.subr.mxu0 0.0
    %1429 = vmatpush1.msra.mxu0 0.0
    %1430 = vmatprep.subr.mxu0 0.0
    %1431 = vmatpush1.msra.mxu0 0.0
    %1432 = vmatprep.subr.mxu0 0.0
    %1433 = vmatpush1.msra.mxu0 0.0
    %1434 = vmatprep.subr.mxu0 0.0
    %1435 = vmatpush1.msra.mxu0 0.0
    %1436 = vmatprep.subr.mxu0 0.0
    %1437 = vmatpush1.msra.mxu0 0.0
    %1438 = vmatprep.subr.mxu0 0.0
    %1439 = vmatpush1.msra.mxu0 0.0
    %1440 = vmatprep.subr.mxu0 0.0
    %1441 = vmatpush1.msra.mxu0 0.0
    %1442 = vmatprep.subr.mxu0 0.0
    %1443 = vmatpush1.msra.mxu0 0.0
    %1444 = vmatprep.subr.mxu0 0.0
    %1445 = vmatpush1.msra.mxu0 0.0
    %1446 = vmatprep.subr.mxu0 0.0
    %1447 = vmatpush1.msra.mxu0 0.0
    %1448 = vmatprep.subr.mxu0 0.0
    %1449 = vmatpush1.msra.mxu0 0.0
    %1450 = vmatprep.subr.mxu0 0.0
    %1451 = vmatpush1.msra.mxu0 0.0
    %1452 = vmatprep.subr.mxu0 0.0
    %1453 = vmatpush1.msra.mxu0 0.0
    %1454 = vmatprep.subr.mxu0 0.0
    %1455 = vmatpush1.msra.mxu0 0.0
    %1456 = vmatprep.subr.mxu0 0.0
    %1457 = vmatpush1.msra.mxu0 0.0
    %1458 = vmatprep.subr.mxu0 0.0
    %1459 = vmatpush1.msra.mxu0 0.0
    %1460 = vmatprep.subr.mxu0 0.0
    %1461 = vmatpush1.msra.mxu0 0.0
    %1462 = vmatprep.subr.mxu0 0.0
    %1463 = vmatpush1.msra.mxu0 0.0
    %1464 = vmatprep.mubr.f32.mxu0 0.0
    %1465 = vmatmul.mubr.f32.gmra.mrb[0].mxu0 %v1395
    %v1466 = vpop.f32.mrb[0].mxu0
    %v1467 = vadd.f32 0.0, %v1466
    %v1468 = vpop.f32.mrb[0].mxu0
    %1469 = vmatprep.mubr.f32.mxu0 0.0
    %1470 = vmatmul.mubr.f32.gmra.mrb[0].mxu0 %v1398
    %v1471 = vpop.f32.mrb[0].mxu0
    %v1472 = vadd.f32 0.0, %v1471
    %v1473 = vpop.f32.mrb[0].mxu0
    %1474 = vdwg.mxu0
    %1477 = vrot.lane.b32.xlu0 %v1467, 8
    %v1478 = vpop.permute.xlu0 %1477
    %1479 = vrot.lane.b32.xlu0 %v1472, 8
    %v1480 = vpop.permute.xlu0 %1479
    %1483 = vst.msk [vmem:[#allocation2 + $0x10] sm:$0xff] %vm642, %v1478
    %1484 = vst.msk [vmem:[#allocation2 + $0x18] sm:$0xff] %vm642, %v1480
    %1485 = vrot.lane.b32.xlu0 %v220, 112
    %v1486 = vpop.permute.xlu0 %1485
    %1487 = vrot.lane.b32.xlu0 %v225, 112
    %v1488 = vpop.permute.xlu0 %1487
    %1489 = vrot.lane.b32.xlu0 %v220, 80
    %v1490 = vpop.permute.xlu0 %1489
    %1491 = vrot.lane.b32.xlu0 %v225, 80
    %v1492 = vpop.permute.xlu0 %1491
    %v1493 = vsel %vm234, %v1486, 0
    %v1495 = vsel %vm234, %v1488, 0
    %v1497 = vsel %vm234, %v1490, 0
    %v1499 = vsel %vm234, %v1492, 0
    %1501 = vmatprep.subr.mxu0 0.0
    %1502 = vmatpush1.xpose.msra.mxu0 %v1497
    %1503 = vmatprep.subr.mxu0 0.0
    %1504 = vmatpush1.xpose.msra.mxu0 %v1499
    %1505 = vmatprep.subr.mxu0 0.0
    %1506 = vmatpush1.xpose.msra.mxu0 0.0
    %1507 = vmatprep.subr.mxu0 0.0
    %1508 = vmatpush1.xpose.msra.mxu0 0.0
    %1509 = vmatprep.subr.mxu0 0.0
    %1510 = vmatpush1.xpose.msra.mxu0 0.0
    %1511 = vmatprep.subr.mxu0 0.0
    %1512 = vmatpush1.xpose.msra.mxu0 0.0
    %1513 = vmatprep.subr.mxu0 0.0
    %1514 = vmatpush1.xpose.msra.mxu0 0.0
    %1515 = vmatprep.subr.mxu0 0.0
    %1516 = vmatpush1.xpose.msra.mxu0 0.0
    %1517 = vmatprep.subr.mxu0 0.0
    %1518 = vmatpush1.xpose.msra.mxu0 0.0
    %1519 = vmatprep.subr.mxu0 0.0
    %1520 = vmatpush1.xpose.msra.mxu0 0.0
    %1521 = vmatprep.subr.mxu0 0.0
    %1522 = vmatpush1.xpose.msra.mxu0 0.0
    %1523 = vmatprep.subr.mxu0 0.0
    %1524 = vmatpush1.xpose.msra.mxu0 0.0
    %1525 = vmatprep.subr.mxu0 0.0
    %1526 = vmatpush1.xpose.msra.mxu0 0.0
    %1527 = vmatprep.subr.mxu0 0.0
    %1528 = vmatpush1.xpose.msra.mxu0 0.0
    %1529 = vmatprep.subr.mxu0 0.0
    %1530 = vmatpush1.xpose.msra.mxu0 0.0
    %1531 = vmatprep.subr.mxu0 0.0
    %1532 = vmatpush1.xpose.msra.mxu0 0.0
    %1533 = vmatprep.subr.mxu0 0.0
    %1534 = vmatpush1.xpose.msra.mxu0 0.0
    %1535 = vmatprep.subr.mxu0 0.0
    %1536 = vmatpush1.xpose.msra.mxu0 0.0
    %1537 = vmatprep.subr.mxu0 0.0
    %1538 = vmatpush1.xpose.msra.mxu0 0.0
    %1539 = vmatprep.subr.mxu0 0.0
    %1540 = vmatpush1.xpose.msra.mxu0 0.0
    %1541 = vmatprep.subr.mxu0 0.0
    %1542 = vmatpush1.xpose.msra.mxu0 0.0
    %1543 = vmatprep.subr.mxu0 0.0
    %1544 = vmatpush1.xpose.msra.mxu0 0.0
    %1545 = vmatprep.subr.mxu0 0.0
    %1546 = vmatpush1.xpose.msra.mxu0 0.0
    %1547 = vmatprep.subr.mxu0 0.0
    %1548 = vmatpush1.xpose.msra.mxu0 0.0
    %1549 = vmatprep.subr.mxu0 0.0
    %1550 = vmatpush1.xpose.msra.mxu0 0.0
    %1551 = vmatprep.subr.mxu0 0.0
    %1552 = vmatpush1.xpose.msra.mxu0 0.0
    %1553 = vmatprep.subr.mxu0 0.0
    %1554 = vmatpush1.xpose.msra.mxu0 0.0
    %1555 = vmatprep.subr.mxu0 0.0
    %1556 = vmatpush1.xpose.msra.mxu0 0.0
    %1557 = vmatprep.subr.mxu0 0.0
    %1558 = vmatpush1.xpose.msra.mxu0 0.0
    %1559 = vmatprep.subr.mxu0 0.0
    %1560 = vmatpush1.xpose.msra.mxu0 0.0
    %1561 = vmatprep.subr.mxu0 0.0
    %1562 = vmatpush1.xpose.msra.mxu0 0.0
    %1563 = vmatprep.subr.mxu0 0.0
    %1564 = vmatpush1.xpose.msra.mxu0 0.0
    %1565 = vmatprep.mubr.f32.mxu0 0.0
    %1566 = vmatmul.mubr.f32.gmra.mrb[0].mxu0 %v1493
    %v1567 = vpop.f32.mrb[0].mxu0
    %v1568 = vadd.f32 0.0, %v1567
    %v1569 = vpop.f32.mrb[0].mxu0
    %1570 = vmatprep.mubr.f32.mxu0 0.0
    %1571 = vmatmul.mubr.f32.gmra.mrb[0].mxu0 %v1495
    %v1572 = vpop.f32.mrb[0].mxu0
    %v1573 = vadd.f32 0.0, %v1572
    %v1574 = vpop.f32.mrb[0].mxu0
    %1575 = vdwg.mxu0
    %v1576 = vmul.f32 %v1568, 0.35355338
    %v1577 = vmul.f32 %v1573, 0.35355338
    %v1578 = vsel %vm320, %v1576, -inf
    %1579 = vmax.xlane.f32.xlu0 %v1578
    %v1580 = vpop.xlane.xlu0 %1579
    %v1581 = vsel %vm320, %v1577, -inf
    %1582 = vmax.xlane.f32.xlu0 %v1581
    %v1583 = vpop.xlane.xlu0 %1582
    %v1584 = vsub.f32 %v1576, %v1580
    %v1585 = vsub.f32 %v1577, %v1583
    %v1586 = vmul.f32 %v1584, 1.442695
    %v1587 = vpow.pop %v1586
    %v1588 = vmul.f32 %v1585, 1.442695
    %v1589 = vpow.pop %v1588
    %v1590 = vsel %vm320, %v1587, 0.0
    %1591 = vadd.xlane.f32.xlu0 %v1590
    %v1592 = vpop.xlane.xlu0 %1591
    %v1593 = vsel %vm320, %v1589, 0.0
    %1594 = vadd.xlane.f32.xlu0 %v1593
    %v1595 = vpop.xlane.xlu0 %1594
    %v1596 = vrcp.pop %v1592
    %v1597 = vrcp.pop %v1595
    %v1598 = vmul.f32 %v1587, %v1596
    %v1599 = vmul.f32 %v1589, %v1597
    %1600 = vrot.lane.b32.xlu0 %v220, 48
    %v1601 = vpop.permute.xlu0 %1600
    %1602 = vrot.lane.b32.xlu0 %v225, 48
    %v1603 = vpop.permute.xlu0 %1602
    %v1607 = vsel %vm320, %v1598, 0
    %v1610 = vsel %vm320, %v1599, 0
    %1612 = vmatprep.subr.mxu0 0.0
    %1613 = vmatpush1.msra.mxu0 %v1601
    %1614 = vmatprep.subr.mxu0 0.0
    %1615 = vmatpush1.msra.mxu0 %v1603
    %1616 = vmatprep.subr.mxu0 0.0
    %1617 = vmatpush1.msra.mxu0 0.0
    %1618 = vmatprep.subr.mxu0 0.0
    %1619 = vmatpush1.msra.mxu0 0.0
    %1620 = vmatprep.subr.mxu0 0.0
    %1621 = vmatpush1.msra.mxu0 0.0
    %1622 = vmatprep.subr.mxu0 0.0
    %1623 = vmatpush1.msra.mxu0 0.0
    %1624 = vmatprep.subr.mxu0 0.0
    %1625 = vmatpush1.msra.mxu0 0.0
    %1626 = vmatprep.subr.mxu0 0.0
    %1627 = vmatpush1.msra.mxu0 0.0
    %1628 = vmatprep.subr.mxu0 0.0
    %1629 = vmatpush1.msra.mxu0 0.0
    %1630 = vmatprep.subr.mxu0 0.0
    %1631 = vmatpush1.msra.mxu0 0.0
    %1632 = vmatprep.subr.mxu0 0.0
    %1633 = vmatpush1.msra.mxu0 0.0
    %1634 = vmatprep.subr.mxu0 0.0
    %1635 = vmatpush1.msra.mxu0 0.0
    %1636 = vmatprep.subr.mxu0 0.0
    %1637 = vmatpush1.msra.mxu0 0.0
    %1638 = vmatprep.subr.mxu0 0.0
    %1639 = vmatpush1.msra.mxu0 0.0
    %1640 = vmatprep.subr.mxu0 0.0
    %1641 = vmatpush1.msra.mxu0 0.0
    %1642 = vmatprep.subr.mxu0 0.0
    %1643 = vmatpush1.msra.mxu0 0.0
    %1644 = vmatprep.subr.mxu0 0.0
    %1645 = vmatpush1.msra.mxu0 0.0
    %1646 = vmatprep.subr.mxu0 0.0
    %1647 = vmatpush1.msra.mxu0 0.0
    %1648 = vmatprep.subr.mxu0 0.0
    %1649 = vmatpush1.msra.mxu0 0.0
    %1650 = vmatprep.subr.mxu0 0.0
    %1651 = vmatpush1.msra.mxu0 0.0
    %1652 = vmatprep.subr.mxu0 0.0
    %1653 = vmatpush1.msra.mxu0 0.0
    %1654 = vmatprep.subr.mxu0 0.0
    %1655 = vmatpush1.msra.mxu0 0.0
    %1656 = vmatprep.subr.mxu0 0.0
    %1657 = vmatpush1.msra.mxu0 0.0
    %1658 = vmatprep.subr.mxu0 0.0
    %1659 = vmatpush1.msra.mxu0 0.0
    %1660 = vmatprep.subr.mxu0 0.0
    %1661 = vmatpush1.msra.mxu0 0.0
    %1662 = vmatprep.subr.mxu0 0.0
    %1663 = vmatpush1.msra.mxu0 0.0
    %1664 = vmatprep.subr.mxu0 0.0
    %1665 = vmatpush1.msra.mxu0 0.0
    %1666 = vmatprep.subr.mxu0 0.0
    %1667 = vmatpush1.msra.mxu0 0.0
    %1668 = vmatprep.subr.mxu0 0.0
    %1669 = vmatpush1.msra.mxu0 0.0
    %1670 = vmatprep.subr.mxu0 0.0
    %1671 = vmatpush1.msra.mxu0 0.0
    %1672 = vmatprep.subr.mxu0 0.0
    %1673 = vmatpush1.msra.mxu0 0.0
    %1674 = vmatprep.subr.mxu0 0.0
    %1675 = vmatpush1.msra.mxu0 0.0
    %1676 = vmatprep.mubr.f32.mxu0 0.0
    %1677 = vmatmul.mubr.f32.gmra.mrb[0].mxu0 %v1607
    %v1678 = vpop.f32.mrb[0].mxu0
    %v1679 = vadd.f32 0.0, %v1678
    %v1680 = vpop.f32.mrb[0].mxu0
    %1681 = vmatprep.mubr.f32.mxu0 0.0
    %1682 = vmatmul.mubr.f32.gmra.mrb[0].mxu0 %v1610
    %v1683 = vpop.f32.mrb[0].mxu0
    %v1684 = vadd.f32 0.0, %v1683
    %v1685 = vpop.f32.mrb[0].mxu0
    %1686 = vdwg.mxu0
    %1689 = vrot.lane.b32.xlu0 %v1679, 16
    %v1690 = vpop.permute.xlu0 %1689
    %1691 = vrot.lane.b32.xlu0 %v1684, 16
    %v1692 = vpop.permute.xlu0 %1691
    %1695 = vst.msk [vmem:[#allocation2 + $0x10] sm:$0xff] %vm855, %v1690
    %1696 = vst.msk [vmem:[#allocation2 + $0x18] sm:$0xff] %vm855, %v1692
    %1697 = vrot.lane.b32.xlu0 %v220, 104
    %v1698 = vpop.permute.xlu0 %1697
    %1699 = vrot.lane.b32.xlu0 %v225, 104
    %v1700 = vpop.permute.xlu0 %1699
    %1701 = vrot.lane.b32.xlu0 %v220, 72
    %v1702 = vpop.permute.xlu0 %1701
    %1703 = vrot.lane.b32.xlu0 %v225, 72
    %v1704 = vpop.permute.xlu0 %1703
    %v1705 = vsel %vm234, %v1698, 0
    %v1707 = vsel %vm234, %v1700, 0
    %v1709 = vsel %vm234, %v1702, 0
    %v1711 = vsel %vm234, %v1704, 0
    %1713 = vmatprep.subr.mxu0 0.0
    %1714 = vmatpush1.xpose.msra.mxu0 %v1709
    %1715 = vmatprep.subr.mxu0 0.0
    %1716 = vmatpush1.xpose.msra.mxu0 %v1711
    %1717 = vmatprep.subr.mxu0 0.0
    %1718 = vmatpush1.xpose.msra.mxu0 0.0
    %1719 = vmatprep.subr.mxu0 0.0
    %1720 = vmatpush1.xpose.msra.mxu0 0.0
    %1721 = vmatprep.subr.mxu0 0.0
    %1722 = vmatpush1.xpose.msra.mxu0 0.0
    %1723 = vmatprep.subr.mxu0 0.0
    %1724 = vmatpush1.xpose.msra.mxu0 0.0
    %1725 = vmatprep.subr.mxu0 0.0
    %1726 = vmatpush1.xpose.msra.mxu0 0.0
    %1727 = vmatprep.subr.mxu0 0.0
    %1728 = vmatpush1.xpose.msra.mxu0 0.0
    %1729 = vmatprep.subr.mxu0 0.0
    %1730 = vmatpush1.xpose.msra.mxu0 0.0
    %1731 = vmatprep.subr.mxu0 0.0
    %1732 = vmatpush1.xpose.msra.mxu0 0.0
    %1733 = vmatprep.subr.mxu0 0.0
    %1734 = vmatpush1.xpose.msra.mxu0 0.0
    %1735 = vmatprep.subr.mxu0 0.0
    %1736 = vmatpush1.xpose.msra.mxu0 0.0
    %1737 = vmatprep.subr.mxu0 0.0
    %1738 = vmatpush1.xpose.msra.mxu0 0.0
    %1739 = vmatprep.subr.mxu0 0.0
    %1740 = vmatpush1.xpose.msra.mxu0 0.0
    %1741 = vmatprep.subr.mxu0 0.0
    %1742 = vmatpush1.xpose.msra.mxu0 0.0
    %1743 = vmatprep.subr.mxu0 0.0
    %1744 = vmatpush1.xpose.msra.mxu0 0.0
    %1745 = vmatprep.subr.mxu0 0.0
    %1746 = vmatpush1.xpose.msra.mxu0 0.0
    %1747 = vmatprep.subr.mxu0 0.0
    %1748 = vmatpush1.xpose.msra.mxu0 0.0
    %1749 = vmatprep.subr.mxu0 0.0
    %1750 = vmatpush1.xpose.msra.mxu0 0.0
    %1751 = vmatprep.subr.mxu0 0.0
    %1752 = vmatpush1.xpose.msra.mxu0 0.0
    %1753 = vmatprep.subr.mxu0 0.0
    %1754 = vmatpush1.xpose.msra.mxu0 0.0
    %1755 = vmatprep.subr.mxu0 0.0
    %1756 = vmatpush1.xpose.msra.mxu0 0.0
    %1757 = vmatprep.subr.mxu0 0.0
    %1758 = vmatpush1.xpose.msra.mxu0 0.0
    %1759 = vmatprep.subr.mxu0 0.0
    %1760 = vmatpush1.xpose.msra.mxu0 0.0
    %1761 = vmatprep.subr.mxu0 0.0
    %1762 = vmatpush1.xpose.msra.mxu0 0.0
    %1763 = vmatprep.subr.mxu0 0.0
    %1764 = vmatpush1.xpose.msra.mxu0 0.0
    %1765 = vmatprep.subr.mxu0 0.0
    %1766 = vmatpush1.xpose.msra.mxu0 0.0
    %1767 = vmatprep.subr.mxu0 0.0
    %1768 = vmatpush1.xpose.msra.mxu0 0.0
    %1769 = vmatprep.subr.mxu0 0.0
    %1770 = vmatpush1.xpose.msra.mxu0 0.0
    %1771 = vmatprep.subr.mxu0 0.0
    %1772 = vmatpush1.xpose.msra.mxu0 0.0
    %1773 = vmatprep.subr.mxu0 0.0
    %1774 = vmatpush1.xpose.msra.mxu0 0.0
    %1775 = vmatprep.subr.mxu0 0.0
    %1776 = vmatpush1.xpose.msra.mxu0 0.0
    %1777 = vmatprep.mubr.f32.mxu0 0.0
    %1778 = vmatmul.mubr.f32.gmra.mrb[0].mxu0 %v1705
    %v1779 = vpop.f32.mrb[0].mxu0
    %v1780 = vadd.f32 0.0, %v1779
    %v1781 = vpop.f32.mrb[0].mxu0
    %1782 = vmatprep.mubr.f32.mxu0 0.0
    %1783 = vmatmul.mubr.f32.gmra.mrb[0].mxu0 %v1707
    %v1784 = vpop.f32.mrb[0].mxu0
    %v1785 = vadd.f32 0.0, %v1784
    %v1786 = vpop.f32.mrb[0].mxu0
    %1787 = vdwg.mxu0
    %v1788 = vmul.f32 %v1780, 0.35355338
    %v1789 = vmul.f32 %v1785, 0.35355338
    %v1790 = vsel %vm320, %v1788, -inf
    %1791 = vmax.xlane.f32.xlu0 %v1790
    %v1792 = vpop.xlane.xlu0 %1791
    %v1793 = vsel %vm320, %v1789, -inf
    %1794 = vmax.xlane.f32.xlu0 %v1793
    %v1795 = vpop.xlane.xlu0 %1794
    %v1796 = vsub.f32 %v1788, %v1792
    %v1797 = vsub.f32 %v1789, %v1795
    %v1798 = vmul.f32 %v1796, 1.442695
    %v1799 = vpow.pop %v1798
    %v1800 = vmul.f32 %v1797, 1.442695
    %v1801 = vpow.pop %v1800
    %v1802 = vsel %vm320, %v1799, 0.0
    %1803 = vadd.xlane.f32.xlu0 %v1802
    %v1804 = vpop.xlane.xlu0 %1803
    %v1805 = vsel %vm320, %v1801, 0.0
    %1806 = vadd.xlane.f32.xlu0 %v1805
    %v1807 = vpop.xlane.xlu0 %1806
    %v1808 = vrcp.pop %v1804
    %v1809 = vrcp.pop %v1807
    %v1810 = vmul.f32 %v1799, %v1808
    %v1811 = vmul.f32 %v1801, %v1809
    %1812 = vrot.lane.b32.xlu0 %v220, 40
    %v1813 = vpop.permute.xlu0 %1812
    %1814 = vrot.lane.b32.xlu0 %v225, 40
    %v1815 = vpop.permute.xlu0 %1814
    %v1819 = vsel %vm320, %v1810, 0
    %v1822 = vsel %vm320, %v1811, 0
    %1824 = vmatprep.subr.mxu0 0.0
    %1825 = vmatpush1.msra.mxu0 %v1813
    %1826 = vmatprep.subr.mxu0 0.0
    %1827 = vmatpush1.msra.mxu0 %v1815
    %1828 = vmatprep.subr.mxu0 0.0
    %1829 = vmatpush1.msra.mxu0 0.0
    %1830 = vmatprep.subr.mxu0 0.0
    %1831 = vmatpush1.msra.mxu0 0.0
    %1832 = vmatprep.subr.mxu0 0.0
    %1833 = vmatpush1.msra.mxu0 0.0
    %1834 = vmatprep.subr.mxu0 0.0
    %1835 = vmatpush1.msra.mxu0 0.0
    %1836 = vmatprep.subr.mxu0 0.0
    %1837 = vmatpush1.msra.mxu0 0.0
    %1838 = vmatprep.subr.mxu0 0.0
    %1839 = vmatpush1.msra.mxu0 0.0
    %1840 = vmatprep.subr.mxu0 0.0
    %1841 = vmatpush1.msra.mxu0 0.0
    %1842 = vmatprep.subr.mxu0 0.0
    %1843 = vmatpush1.msra.mxu0 0.0
    %1844 = vmatprep.subr.mxu0 0.0
    %1845 = vmatpush1.msra.mxu0 0.0
    %1846 = vmatprep.subr.mxu0 0.0
    %1847 = vmatpush1.msra.mxu0 0.0
    %1848 = vmatprep.subr.mxu0 0.0
    %1849 = vmatpush1.msra.mxu0 0.0
    %1850 = vmatprep.subr.mxu0 0.0
    %1851 = vmatpush1.msra.mxu0 0.0
    %1852 = vmatprep.subr.mxu0 0.0
    %1853 = vmatpush1.msra.mxu0 0.0
    %1854 = vmatprep.subr.mxu0 0.0
    %1855 = vmatpush1.msra.mxu0 0.0
    %1856 = vmatprep.subr.mxu0 0.0
    %1857 = vmatpush1.msra.mxu0 0.0
    %1858 = vmatprep.subr.mxu0 0.0
    %1859 = vmatpush1.msra.mxu0 0.0
    %1860 = vmatprep.subr.mxu0 0.0
    %1861 = vmatpush1.msra.mxu0 0.0
    %1862 = vmatprep.subr.mxu0 0.0
    %1863 = vmatpush1.msra.mxu0 0.0
    %1864 = vmatprep.subr.mxu0 0.0
    %1865 = vmatpush1.msra.mxu0 0.0
    %1866 = vmatprep.subr.mxu0 0.0
    %1867 = vmatpush1.msra.mxu0 0.0
    %1868 = vmatprep.subr.mxu0 0.0
    %1869 = vmatpush1.msra.mxu0 0.0
    %1870 = vmatprep.subr.mxu0 0.0
    %1871 = vmatpush1.msra.mxu0 0.0
    %1872 = vmatprep.subr.mxu0 0.0
    %1873 = vmatpush1.msra.mxu0 0.0
    %1874 = vmatprep.subr.mxu0 0.0
    %1875 = vmatpush1.msra.mxu0 0.0
    %1876 = vmatprep.subr.mxu0 0.0
    %1877 = vmatpush1.msra.mxu0 0.0
    %1878 = vmatprep.subr.mxu0 0.0
    %1879 = vmatpush1.msra.mxu0 0.0
    %1880 = vmatprep.subr.mxu0 0.0
    %1881 = vmatpush1.msra.mxu0 0.0
    %1882 = vmatprep.subr.mxu0 0.0
    %1883 = vmatpush1.msra.mxu0 0.0
    %1884 = vmatprep.subr.mxu0 0.0
    %1885 = vmatpush1.msra.mxu0 0.0
    %1886 = vmatprep.subr.mxu0 0.0
    %1887 = vmatpush1.msra.mxu0 0.0
    %1888 = vmatprep.mubr.f32.mxu0 0.0
    %1889 = vmatmul.mubr.f32.gmra.mrb[0].mxu0 %v1819
    %v1890 = vpop.f32.mrb[0].mxu0
    %v1891 = vadd.f32 0.0, %v1890
    %v1892 = vpop.f32.mrb[0].mxu0
    %1893 = vmatprep.mubr.f32.mxu0 0.0
    %1894 = vmatmul.mubr.f32.gmra.mrb[0].mxu0 %v1822
    %v1895 = vpop.f32.mrb[0].mxu0
    %v1896 = vadd.f32 0.0, %v1895
    %v1897 = vpop.f32.mrb[0].mxu0
    %1898 = vdwg.mxu0
    %1901 = vrot.lane.b32.xlu0 %v1891, 24
    %v1902 = vpop.permute.xlu0 %1901
    %1903 = vrot.lane.b32.xlu0 %v1896, 24
    %v1904 = vpop.permute.xlu0 %1903
    %1907 = vst.msk [vmem:[#allocation2 + $0x10] sm:$0xff] %vm1068, %v1902
    %1908 = vst.msk [vmem:[#allocation2 + $0x18] sm:$0xff] %vm1068, %v1904
    %v1909 = vld [vmem:[#allocation2] sm:$0xff]
    %v1910 = vld [vmem:[#allocation2 + $0x8] sm:$0xff]
    %v1911 = vld [vmem:[#allocation2 + $0x10] sm:$0xff]
    %v1912 = vld [vmem:[#allocation2 + $0x18] sm:$0xff]
    %v1913 = vld [vmem:[#allocation8] sm:$0xff]
    %v1914 = vld [vmem:[#allocation8 + $0x8] sm:$0xff]
    %v1915 = vld [vmem:[#allocation8 + $0x10] sm:$0xff]
    %v1916 = vld [vmem:[#allocation8 + $0x18] sm:$0xff]
    %v1918 = vsel %vm66, %v1909, 0
    %v1921 = vsel %vm66, %v1910, 0
    %v1924 = vsel %vm66, %v1911, 0
    %v1927 = vsel %vm66, %v1912, 0
    %1929 = vmatprep.subr.mxu0 0.0
    %1930 = vmatpush1.msra.mxu0 %v1913
    %1931 = vmatprep.subr.mxu0 0.0
    %1932 = vmatpush1.msra.mxu0 %v1914
    %1933 = vmatprep.subr.mxu0 0.0
    %1934 = vmatpush1.msra.mxu0 %v1915
    %1935 = vmatprep.subr.mxu0 0.0
    %1936 = vmatpush1.msra.mxu0 %v1916
    %1937 = vmatprep.subr.mxu0 0.0
    %1938 = vmatpush1.msra.mxu0 0.0
    %1939 = vmatprep.subr.mxu0 0.0
    %1940 = vmatpush1.msra.mxu0 0.0
    %1941 = vmatprep.subr.mxu0 0.0
    %1942 = vmatpush1.msra.mxu0 0.0
    %1943 = vmatprep.subr.mxu0 0.0
    %1944 = vmatpush1.msra.mxu0 0.0
    %1945 = vmatprep.subr.mxu0 0.0
    %1946 = vmatpush1.msra.mxu0 0.0
    %1947 = vmatprep.subr.mxu0 0.0
    %1948 = vmatpush1.msra.mxu0 0.0
    %1949 = vmatprep.subr.mxu0 0.0
    %1950 = vmatpush1.msra.mxu0 0.0
    %1951 = vmatprep.subr.mxu0 0.0
    %1952 = vmatpush1.msra.mxu0 0.0
    %1953 = vmatprep.subr.mxu0 0.0
    %1954 = vmatpush1.msra.mxu0 0.0
    %1955 = vmatprep.subr.mxu0 0.0
    %1956 = vmatpush1.msra.mxu0 0.0
    %1957 = vmatprep.subr.mxu0 0.0
    %1958 = vmatpush1.msra.mxu0 0.0
    %1959 = vmatprep.subr.mxu0 0.0
    %1960 = vmatpush1.msra.mxu0 0.0
    %1961 = vmatprep.subr.mxu0 0.0
    %1962 = vmatpush1.msra.mxu0 0.0
    %1963 = vmatprep.subr.mxu0 0.0
    %1964 = vmatpush1.msra.mxu0 0.0
    %1965 = vmatprep.subr.mxu0 0.0
    %1966 = vmatpush1.msra.mxu0 0.0
    %1967 = vmatprep.subr.mxu0 0.0
    %1968 = vmatpush1.msra.mxu0 0.0
    %1969 = vmatprep.subr.mxu0 0.0
    %1970 = vmatpush1.msra.mxu0 0.0
    %1971 = vmatprep.subr.mxu0 0.0
    %1972 = vmatpush1.msra.mxu0 0.0
    %1973 = vmatprep.subr.mxu0 0.0
    %1974 = vmatpush1.msra.mxu0 0.0
    %1975 = vmatprep.subr.mxu0 0.0
    %1976 = vmatpush1.msra.mxu0 0.0
    %1977 = vmatprep.subr.mxu0 0.0
    %1978 = vmatpush1.msra.mxu0 0.0
    %1979 = vmatprep.subr.mxu0 0.0
    %1980 = vmatpush1.msra.mxu0 0.0
    %1981 = vmatprep.subr.mxu0 0.0
    %1982 = vmatpush1.msra.mxu0 0.0
    %1983 = vmatprep.subr.mxu0 0.0
    %1984 = vmatpush1.msra.mxu0 0.0
    %1985 = vmatprep.subr.mxu0 0.0
    %1986 = vmatpush1.msra.mxu0 0.0
    %1987 = vmatprep.subr.mxu0 0.0
    %1988 = vmatpush1.msra.mxu0 0.0
    %1989 = vmatprep.subr.mxu0 0.0
    %1990 = vmatpush1.msra.mxu0 0.0
    %1991 = vmatprep.subr.mxu0 0.0
    %1992 = vmatpush1.msra.mxu0 0.0
    %1993 = vmatprep.mubr.f32.mxu0 0.0
    %1994 = vmatmul.mubr.f32.gmra.mrb[0].mxu0 %v1918
    %v1995 = vpop.f32.mrb[0].mxu0
    %v1996 = vadd.f32 0.0, %v1995
    %v1997 = vpop.f32.mrb[0].mxu0
    %1998 = vmatprep.mubr.f32.mxu0 0.0
    %1999 = vmatmul.mubr.f32.gmra.mrb[0].mxu0 %v1921
    %v2000 = vpop.f32.mrb[0].mxu0
    %v2001 = vadd.f32 0.0, %v2000
    %v2002 = vpop.f32.mrb[0].mxu0
    %2003 = vmatprep.mubr.f32.mxu0 0.0
    %2004 = vmatmul.mubr.f32.gmra.mrb[0].mxu0 %v1924
    %v2005 = vpop.f32.mrb[0].mxu0
    %v2006 = vadd.f32 0.0, %v2005
    %v2007 = vpop.f32.mrb[0].mxu0
    %2008 = vmatprep.mubr.f32.mxu0 0.0
    %2009 = vmatmul.mubr.f32.gmra.mrb[0].mxu0 %v1927
    %v2010 = vpop.f32.mrb[0].mxu0
    %v2011 = vadd.f32 0.0, %v2010
    %v2012 = vpop.f32.mrb[0].mxu0
    %2013 = vdwg.mxu0
    %2014 = vst.msk [vmem:[#allocation9] sm:$0xff] %vm66, %v1996
    %2015 = vst.msk [vmem:[#allocation9 + $0x8] sm:$0xff] %vm66, %v2001
    %2016 = vst.msk [vmem:[#allocation9 + $0x10] sm:$0xff] %vm66, %v2006
    %2017 = vst.msk [vmem:[#allocation9 + $0x18] sm:$0xff] %vm66, %v2011
    // Predicated region
    $region34: #{tpu_custom_call.1} parent=1 // pred_check
      _
    $region35: #{tpu_custom_call.1} parent=1 // pred_check_branch
      %2019 = sbr.rel (0) target = $region37
    $region36: #{tpu_custom_call.1} parent=1 // pred_region
      %s2021 = ssub.s32 512, 512
      %2022 = vsyncadd [#allocation5], %s2021
      %s2023 = sshll.u32 [#allocation9], 4
      %s2024 = int_to_ptr.vmem [resolvable:$true] %s2023
      %2029 = dma.vmem_to_hbm [thread:$0]  %s2024, 512, %s5, [#allocation5], 128, 128, 8
    $region37: #{tpu_custom_call.1} parent=1 // pred_fallthru
      _
    // Predicated region
    $region38: #{tpu_custom_call.1} parent=1 // pred_check
      _
    $region39: #{tpu_custom_call.1} parent=1 // pred_check_branch
      %2031 = sbr.rel (0) target = $region41
    $region40: #{tpu_custom_call.1} parent=1 // pred_region
      %2032 = dma.done [#allocation5], 512
    $region41: #{tpu_custom_call.1} parent=1 // pred_fallthru
      _
    %2033 = vsyncpa [#allocation4], 1
    %2034 = vsyncpa [#allocation7], 1
    %2035 = vsyncpa [#allocation5], 1

</llo_original>
